<compile_context>
chip_gen: v7x
topology: tpu7x:2x2x1
jax: 0.10.0
libtpu: 0.0.40
codegen_flags: <defaults>
</compile_context>

<pallas_src>
import functools

import numpy as np

import jax
import jax.numpy as jnp
from jax.experimental import pallas as pl
from jax.experimental.pallas import tpu as pltpu


def _round_up(x, m):
    return ((x + m - 1) // m) * m


# ----------------------------------------------------------------------------
# Fused forward kernel: all conv layers + FC + sigmoid for Bt batch elements.
# ----------------------------------------------------------------------------
def _make_fused_kernel(num_conv_layers, batch_block):
    def kernel(*refs):
        x_ref = refs[0]                                   # (Bt, H, Kp0) f32
        conv_refs = refs[1:1 + 2 * num_conv_layers]
        fcw_ref, fcb_ref, out_ref = refs[1 + 2 * num_conv_layers:]

        rows = []
        # Unrolled over the batch block: Bt independent matmul chains keep the
        # MXU FIFO full instead of stalling on one dependent chain.
        for bi in range(batch_block):
            # Activation layout: rows = H, lanes = W*C (channel fastest),
            # zero-padded to a multiple of 128 lanes.
            fx = x_ref[bi]                                # (H, Kp)

            for l in range(num_conv_layers):
                w_ref = conv_refs[2 * l]                  # (3*Kp_in, Np_out) bf16
                b_ref = conv_refs[2 * l + 1]              # (1, Np_out) f32
                ho = fx.shape[0] - 2
                # Valid 3x3 conv as ONE matmul: lane-concatenate the 3 dy-shifted
                # row slices (K = 3*Kp_in) against the K-concat banded weight.
                xcat = jnp.concatenate(
                    [fx[0:ho, :], fx[1:1 + ho, :], fx[2:2 + ho, :]], axis=-1)
                acc = jnp.dot(xcat.astype(w_ref.dtype), w_ref[...],
                              preferred_element_type=jnp.float32)
                fx = jnp.maximum(acc + b_ref[...], 0.0)   # bias + ReLU fused (f32)

            # FC + sigmoid: lane-concatenate the Hf activation rows into one
            # (1, Hf*Kp) row and do a single f32 matmul against the
            # host-flattened, pre-permuted FC weight (Hf*Kp, Op).
            hf = fx.shape[0]
            xrow = jnp.concatenate([fx[r:r + 1, :] for r in range(hf)], axis=-1)
            z = jnp.dot(xrow, fcw_ref[...],
                        preferred_element_type=jnp.float32) + fcb_ref[...]
            rows.append(1.0 / (1.0 + jnp.exp(-z)))        # (1, Op)

        res = rows[0] if batch_block == 1 else jnp.concatenate(rows, axis=0)
        # Single lane-dense (Bt, 128) store; padded lanes are sliced off outside.
        out_ref[...] = res[None].astype(out_ref.dtype)

    return kernel


def image_classification_forward(x_nchw, kparams, batch_block=None):
    """Forward pass matching ImageClassification.forward; returns (bs*O,)."""
    b, c, h, w = x_nchw.shape
    kp0 = kparams["kp_in0"]
    op = kparams["out_pad"]
    o = kparams["out_dim"]
    num_layers = len(kparams["convs"])

    if batch_block is None:
        # Keep >= 2 grid steps so both v7x TensorCores get work; on v5e/v6e
        # (1 TC) this is a no-op.
        batch_block = max(1, (b + 1) // 2)
    num_steps = -(-b // batch_block)
    b_pad = num_steps * batch_block

    # NCHW -> (B, H, W*C), lane-pad W*C to a multiple of 128 and batch-pad to a
    # multiple of the block; cheap one-time XLA ops, after which the
    # activations stay in VMEM for the whole fused kernel.
    x2d = jnp.transpose(x_nchw, (0, 2, 3, 1)).reshape(b, h, w * c)
    x2d = jnp.pad(x2d, ((0, b_pad - b), (0, 0), (0, kp0 - w * c)))

    inputs = [x2d]
    in_specs = [pl.BlockSpec((batch_block, h, kp0), lambda i: (i, 0, 0))]
    for (wband, btile) in kparams["convs"]:
        inputs += [wband, btile]
        in_specs += [pl.BlockSpec(wband.shape, lambda i: (0, 0)),
                     pl.BlockSpec(btile.shape, lambda i: (0, 0))]
    fcw, fcb = kparams["fc"]
    inputs += [fcw, fcb]
    in_specs += [pl.BlockSpec(fcw.shape, lambda i: (0, 0)),
                 pl.BlockSpec(fcb.shape, lambda i: (0, 0))]

    out = pl.pallas_call(
        _make_fused_kernel(num_layers, batch_block),
        out_shape=jax.ShapeDtypeStruct((num_steps, batch_block, op),
                                       x_nchw.dtype),
        grid=(num_steps,),
        in_specs=in_specs,
        out_specs=pl.BlockSpec((1, batch_block, op), lambda i: (i, 0, 0)),
        compiler_params=pltpu.CompilerParams(
            dimension_semantics=("parallel",)),
    )(*inputs)

    out = out.reshape(b_pad, op)[:b, :o]
    return out.reshape(-1)                                # matches fx.view(-1)


# ----------------------------------------------------------------------------
# Parameter construction (PyTorch layouts) and one-time host-side conversion
# to the kernel's K-concat banded / pre-permuted, lane-padded layouts.
# ----------------------------------------------------------------------------
def init_torch_params(key, input_dim, hidden_dims, output_dim, flat_features):
    """PyTorch-layout weights with PyTorch-style uniform(-1/sqrt(fan_in)) init."""
    chans = [input_dim] + list(hidden_dims)
    convs = []
    for i in range(len(hidden_dims)):
        key, kw, kb = jax.random.split(key, 3)
        s = 1.0 / np.sqrt(chans[i] * 9)
        w = jax.random.uniform(kw, (chans[i + 1], chans[i], 3, 3),
                               jnp.float32, -s, s)        # (Cout, Cin, 3, 3)
        b = jax.random.uniform(kb, (chans[i + 1],), jnp.float32, -s, s)
        convs.append((w, b))
    key, kw, kb = jax.random.split(key, 3)
    s = 1.0 / np.sqrt(flat_features)
    fc_w = jax.random.uniform(kw, (output_dim, flat_features), jnp.float32, -s, s)
    fc_b = jax.random.uniform(kb, (output_dim,), jnp.float32, -s, s)
    return {"convs": convs, "fc_w": fc_w, "fc_b": fc_b}


def _band_weight(w_oihw, in_width, kp_in):
    """(Cout,Cin,3,3) -> K-concat banded (3*Kp_in, Np_out) bf16.

    Row index dy*Kp_in + (j+dx)*Cin + ci, column j*Cout + co; zero-padded so
    the conv is a single unmasked-lane MXU matmul.  Each tap is replicated Wo
    times (see TODO at top of file re: scalability).
    """
    cout, cin, _, _ = w_oihw.shape
    wo = in_width - 2
    np_out = _round_up(wo * cout, 128)
    w_np = np.asarray(w_oihw, np.float32)
    band = np.zeros((3 * kp_in, np_out), np.float32)
    for dy in range(3):
        for dx in range(3):
            tap = w_np[:, :, dy, dx].T                    # (Cin, Cout)
            for j in range(wo):
                r0 = dy * kp_in + (j + dx) * cin
                band[r0:r0 + cin, j * cout:(j + 1) * cout] = tap
    return jnp.asarray(band, jnp.bfloat16), np_out


def _tiled_bias(b, wo, np_out):
    cout = int(np.asarray(b).shape[0])
    t = np.zeros((1, np_out), np.float32)
    t[0, :wo * cout] = np.tile(np.asarray(b, np.float32), wo)
    return jnp.asarray(t)


def prepare_kernel_params(torch_params, in_channels, spatial):
    """Host-side, one-time layout conversion of PyTorch weights to kernel form."""
    convs = []
    s, cin = spatial, in_channels
    kp_in0 = _round_up(s * cin, 128)
    kp_in = kp_in0
    for (w, b) in torch_params["convs"]:
        cout = w.shape[0]
        wo = s - 2
        band, np_out = _band_weight(w, s, kp_in)
        convs.append((band, _tiled_bias(b, wo, np_out)))
        s, cin, kp_in = wo, cout, np_out                  # next layer's layout

    o = torch_params["fc_w"].shape[0]
    op = _round_up(o, 128)                                # lane-dense output
    # Permute fc_w from PyTorch NCHW-flatten order to the kernel's (H, W*C)
    # layout, then flatten to (Hf*Kp, Op) matching the in-kernel row concat,
    # zero-padding the K rows for padded lanes and the O columns to 128.
    fcw = np.asarray(torch_params["fc_w"], np.float32).reshape(o, cin, s, s)
    fcw = np.transpose(fcw, (2, 3, 1, 0)).reshape(s, s * cin, o)  # (Hf, Wf*Cf, O)
    fcw_flat = np.zeros((s * kp_in, op), np.float32)
    for r in range(s):
        fcw_flat[r * kp_in: r * kp_in + s * cin, :o] = fcw[r]
    fcb = np.zeros((1, op), np.float32)
    fcb[0, :o] = np.asarray(torch_params["fc_b"], np.float32)
    return {"convs": convs, "fc": (jnp.asarray(fcw_flat), jnp.asarray(fcb)),
            "kp_in0": kp_in0, "out_pad": op, "out_dim": o}


# ----------------------------------------------------------------------------
# Pure-JAX reference of the PyTorch module (for correctness checking).
# ----------------------------------------------------------------------------
def reference_forward(x, torch_params):
    fx = x
    for (w, b) in torch_params["convs"]:
        fx = jax.lax.conv_general_dilated(
            fx, w, window_strides=(1, 1), padding="VALID",
            dimension_numbers=("NCHW", "OIHW", "NCHW"),
            precision=jax.lax.Precision.HIGHEST)
        fx = jnp.maximum(fx + b.reshape(1, -1, 1, 1), 0.0)
    bs = x.shape[0]
    fx = fx.reshape(bs, -1)
    z = jnp.dot(fx, torch_params["fc_w"].T,
                precision=jax.lax.Precision.HIGHEST) + torch_params["fc_b"]
    return jax.nn.sigmoid(z).reshape(-1)


if __name__ == "__main__":
    # Small shapes consistent with the module's forward.
    batch, in_ch, spatial = 2, 4, 16
    hidden_dims = [8, 16]          # args['hidden_layers']
    output_dim = 2                 # args['output_dim']

    # Each valid 3x3 conv shrinks spatial dims by 2.
    final_spatial = spatial - 2 * len(hidden_dims)
    flat_features = hidden_dims[-1] * final_spatial * final_spatial
    # TODO(synk): the original module hardcodes nn.Linear(25088, output_dim);
    # at these small test shapes the flatten size is `flat_features`, so the fc
    # in_features is sized to match (semantics otherwise identical).

    key = jax.random.PRNGKey(0)
    key, kx = jax.random.split(key)
    x = jax.random.normal(kx, (batch, in_ch, spatial, spatial), jnp.float32)  # NCHW

    torch_params = init_torch_params(jax.random.PRNGKey(42), in_ch,
                                     hidden_dims, output_dim, flat_features)
    kparams = prepare_kernel_params(torch_params, in_ch, spatial)

    fwd = jax.jit(functools.partial(image_classification_forward,
                                    kparams=kparams))
    out = jax.block_until_ready(fwd(x))

    assert out.shape == (batch * output_dim,), out.shape
    assert bool(jnp.all((out >= 0.0) & (out <= 1.0)))

    # Numerical check against the pure-JAX (HIGHEST precision) reference of the
    # PyTorch module.  Conv matmuls use bf16 operands with f32 accumulation;
    # the FC matmul and all elementwise math stay f32, keeping the error well
    # inside the 5e-3 tolerance.
    ref = reference_forward(x, torch_params)
    max_err = float(jnp.max(jnp.abs(out - ref)))
    assert max_err < 5e-3, f"max abs err vs reference: {max_err}"
    print("KERNEL_OK")
</pallas_src>

<mosaic_0001>
module attributes {stable_mosaic.version = 11 : i64} {
  func.func @kernel(%arg0: i32, %arg1: memref<1x16x128xf32, #tpu.memory_space<vmem>>, %arg2: memref<384x128xbf16, #tpu.memory_space<vmem>>, %arg3: memref<1x128xf32, #tpu.memory_space<vmem>>, %arg4: memref<384x256xbf16, #tpu.memory_space<vmem>>, %arg5: memref<1x256xf32, #tpu.memory_space<vmem>>, %arg6: memref<3072x128xf32, #tpu.memory_space<vmem>>, %arg7: memref<1x128xf32, #tpu.memory_space<vmem>>, %arg8: memref<1x1x128xf32, #tpu.memory_space<vmem>>) attributes {dimension_semantics = [#tpu.dimension_semantics<parallel>], iteration_bounds = array<i64: 2>, scalar_prefetch = 0 : i64, scratch_operands = 0 : i64, tpu.core_type = #tpu.core_type<tc>, window_params = [{transform_indices = @transform_0, window_bounds = array<i64: 1, 16, 128>}, {pipeline_mode = #tpu.pipeline_mode<synchronous>, transform_indices = @transform_1, window_bounds = array<i64: 384, 128>}, {pipeline_mode = #tpu.pipeline_mode<synchronous>, transform_indices = @transform_2, window_bounds = array<i64: 1, 128>}, {pipeline_mode = #tpu.pipeline_mode<synchronous>, transform_indices = @transform_3, window_bounds = array<i64: 384, 256>}, {pipeline_mode = #tpu.pipeline_mode<synchronous>, transform_indices = @transform_4, window_bounds = array<i64: 1, 256>}, {pipeline_mode = #tpu.pipeline_mode<synchronous>, transform_indices = @transform_5, window_bounds = array<i64: 3072, 128>}, {pipeline_mode = #tpu.pipeline_mode<synchronous>, transform_indices = @transform_6, window_bounds = array<i64: 1, 128>}, {transform_indices = @transform_7, window_bounds = array<i64: 1, 1, 128>}]} {
    %c0 = arith.constant 0 : index
    %c0_0 = arith.constant 0 : index
    %c0_1 = arith.constant 0 : index
    %0 = vector.load %arg1[%c0, %c0_0, %c0_1] : memref<1x16x128xf32, #tpu.memory_space<vmem>>, vector<1x16x128xf32>
    %1 = vector.shape_cast %0 : vector<1x16x128xf32> to vector<16x128xf32>
    %2 = vector.extract_strided_slice %1 {offsets = [0, 0], sizes = [14, 128], strides = [1, 1]} : vector<16x128xf32> to vector<14x128xf32>
    %3 = vector.extract_strided_slice %1 {offsets = [1, 0], sizes = [14, 128], strides = [1, 1]} : vector<16x128xf32> to vector<14x128xf32>
    %4 = vector.extract_strided_slice %1 {offsets = [2, 0], sizes = [14, 128], strides = [1, 1]} : vector<16x128xf32> to vector<14x128xf32>
    %5 = tpu.concatenate %2, %3, %4 in 1 : vector<14x128xf32>, vector<14x128xf32>, vector<14x128xf32> -> vector<14x384xf32>
    %6 = arith.truncf %5 : vector<14x384xf32> to vector<14x384xbf16>
    %c0_2 = arith.constant 0 : index
    %c0_3 = arith.constant 0 : index
    %7 = vector.load %arg2[%c0_2, %c0_3] : memref<384x128xbf16, #tpu.memory_space<vmem>>, vector<384x128xbf16>
    %cst = arith.constant dense<0.000000e+00> : vector<14x128xf32>
    %8 = tpu.matmul %6, %7, %cst {dimension_numbers = #tpu.dot_dimension_numbers<[1], [0], [0], [1], [0, 0, 1, 1], [], []>} : vector<14x384xbf16>, vector<384x128xbf16>, vector<14x128xf32> -> vector<14x128xf32>
    %c0_4 = arith.constant 0 : index
    %c0_5 = arith.constant 0 : index
    %9 = vector.load %arg3[%c0_4, %c0_5] : memref<1x128xf32, #tpu.memory_space<vmem>>, vector<1x128xf32>
    %10 = vector.broadcast %9 : vector<1x128xf32> to vector<14x128xf32>
    %11 = arith.addf %8, %10 : vector<14x128xf32>
    %cst_6 = arith.constant 0.000000e+00 : f32
    %12 = vector.broadcast %cst_6 : f32 to vector<14x128xf32>
    %13 = arith.maximumf %11, %12 : vector<14x128xf32>
    %14 = vector.extract_strided_slice %13 {offsets = [0, 0], sizes = [12, 128], strides = [1, 1]} : vector<14x128xf32> to vector<12x128xf32>
    %15 = vector.extract_strided_slice %13 {offsets = [1, 0], sizes = [12, 128], strides = [1, 1]} : vector<14x128xf32> to vector<12x128xf32>
    %16 = vector.extract_strided_slice %13 {offsets = [2, 0], sizes = [12, 128], strides = [1, 1]} : vector<14x128xf32> to vector<12x128xf32>
    %17 = tpu.concatenate %14, %15, %16 in 1 : vector<12x128xf32>, vector<12x128xf32>, vector<12x128xf32> -> vector<12x384xf32>
    %18 = arith.truncf %17 : vector<12x384xf32> to vector<12x384xbf16>
    %c0_7 = arith.constant 0 : index
    %c0_8 = arith.constant 0 : index
    %19 = vector.load %arg4[%c0_7, %c0_8] : memref<384x256xbf16, #tpu.memory_space<vmem>>, vector<384x256xbf16>
    %cst_9 = arith.constant dense<0.000000e+00> : vector<12x256xf32>
    %20 = tpu.matmul %18, %19, %cst_9 {dimension_numbers = #tpu.dot_dimension_numbers<[1], [0], [0], [1], [0, 0, 1, 1], [], []>} : vector<12x384xbf16>, vector<384x256xbf16>, vector<12x256xf32> -> vector<12x256xf32>
    %c0_10 = arith.constant 0 : index
    %c0_11 = arith.constant 0 : index
    %21 = vector.load %arg5[%c0_10, %c0_11] : memref<1x256xf32, #tpu.memory_space<vmem>>, vector<1x256xf32>
    %22 = vector.broadcast %21 : vector<1x256xf32> to vector<12x256xf32>
    %23 = arith.addf %20, %22 : vector<12x256xf32>
    %cst_12 = arith.constant 0.000000e+00 : f32
    %24 = vector.broadcast %cst_12 : f32 to vector<12x256xf32>
    %25 = arith.maximumf %23, %24 : vector<12x256xf32>
    %26 = vector.extract_strided_slice %25 {offsets = [0, 0], sizes = [1, 256], strides = [1, 1]} : vector<12x256xf32> to vector<1x256xf32>
    %27 = vector.extract_strided_slice %25 {offsets = [1, 0], sizes = [1, 256], strides = [1, 1]} : vector<12x256xf32> to vector<1x256xf32>
    %28 = vector.extract_strided_slice %25 {offsets = [2, 0], sizes = [1, 256], strides = [1, 1]} : vector<12x256xf32> to vector<1x256xf32>
    %29 = vector.extract_strided_slice %25 {offsets = [3, 0], sizes = [1, 256], strides = [1, 1]} : vector<12x256xf32> to vector<1x256xf32>
    %30 = vector.extract_strided_slice %25 {offsets = [4, 0], sizes = [1, 256], strides = [1, 1]} : vector<12x256xf32> to vector<1x256xf32>
    %31 = vector.extract_strided_slice %25 {offsets = [5, 0], sizes = [1, 256], strides = [1, 1]} : vector<12x256xf32> to vector<1x256xf32>
    %32 = vector.extract_strided_slice %25 {offsets = [6, 0], sizes = [1, 256], strides = [1, 1]} : vector<12x256xf32> to vector<1x256xf32>
    %33 = vector.extract_strided_slice %25 {offsets = [7, 0], sizes = [1, 256], strides = [1, 1]} : vector<12x256xf32> to vector<1x256xf32>
    %34 = vector.extract_strided_slice %25 {offsets = [8, 0], sizes = [1, 256], strides = [1, 1]} : vector<12x256xf32> to vector<1x256xf32>
    %35 = vector.extract_strided_slice %25 {offsets = [9, 0], sizes = [1, 256], strides = [1, 1]} : vector<12x256xf32> to vector<1x256xf32>
    %36 = vector.extract_strided_slice %25 {offsets = [10, 0], sizes = [1, 256], strides = [1, 1]} : vector<12x256xf32> to vector<1x256xf32>
    %37 = vector.extract_strided_slice %25 {offsets = [11, 0], sizes = [1, 256], strides = [1, 1]} : vector<12x256xf32> to vector<1x256xf32>
    %38 = tpu.concatenate %26, %27, %28, %29, %30, %31, %32, %33, %34, %35, %36, %37 in 1 : vector<1x256xf32>, vector<1x256xf32>, vector<1x256xf32>, vector<1x256xf32>, vector<1x256xf32>, vector<1x256xf32>, vector<1x256xf32>, vector<1x256xf32>, vector<1x256xf32>, vector<1x256xf32>, vector<1x256xf32>, vector<1x256xf32> -> vector<1x3072xf32>
    %c0_13 = arith.constant 0 : index
    %c0_14 = arith.constant 0 : index
    %39 = vector.load %arg6[%c0_13, %c0_14] : memref<3072x128xf32, #tpu.memory_space<vmem>>, vector<3072x128xf32>
    %cst_15 = arith.constant dense<0.000000e+00> : vector<1x128xf32>
    %40 = tpu.matmul %38, %39, %cst_15 {dimension_numbers = #tpu.dot_dimension_numbers<[1], [0], [0], [1], [0, 0, 1, 1], [], []>} : vector<1x3072xf32>, vector<3072x128xf32>, vector<1x128xf32> -> vector<1x128xf32>
    %c0_16 = arith.constant 0 : index
    %c0_17 = arith.constant 0 : index
    %41 = vector.load %arg7[%c0_16, %c0_17] : memref<1x128xf32, #tpu.memory_space<vmem>>, vector<1x128xf32>
    %42 = arith.addf %40, %41 : vector<1x128xf32>
    %cst_18 = arith.constant 0.000000e+00 : f32
    %43 = vector.broadcast %cst_18 : f32 to vector<1x128xf32>
    %44 = arith.subf %43, %42 : vector<1x128xf32>
    %45 = math.exp %44 : vector<1x128xf32>
    %cst_19 = arith.constant 1.000000e+00 : f32
    %46 = vector.broadcast %cst_19 : f32 to vector<1x128xf32>
    %47 = arith.addf %46, %45 : vector<1x128xf32>
    %cst_20 = arith.constant 1.000000e+00 : f32
    %48 = vector.broadcast %cst_20 : f32 to vector<1x128xf32>
    %49 = arith.divf %48, %47 : vector<1x128xf32>
    %50 = vector.shape_cast %49 : vector<1x128xf32> to vector<1x1x128xf32>
    %c0_21 = arith.constant 0 : index
    %c0_22 = arith.constant 0 : index
    %c0_23 = arith.constant 0 : index
    %51 = vector.load %arg8[%c0_21, %c0_22, %c0_23] : memref<1x1x128xf32, #tpu.memory_space<vmem>>, vector<1x1x128xf32>
    tpu.vector_store %arg8[%c0_21, %c0_22, %c0_23], %50 {strides = array<i32>} : memref<1x1x128xf32, #tpu.memory_space<vmem>>, vector<1x1x128xf32>,
    return
  }
  func.func @transform_0(%arg0: i32) -> (i32, i32, i32) {
    %c0_i32 = arith.constant 0 : i32
    %c0_i32_0 = arith.constant 0 : i32
    %c0_i32_1 = arith.constant 0 : i32
    return %arg0, %c0_i32, %c0_i32_0 : i32, i32, i32
  }
  func.func @transform_1(%arg0: i32) -> (i32, i32) {
    %c0_i32 = arith.constant 0 : i32
    %c0_i32_0 = arith.constant 0 : i32
    %c0_i32_1 = arith.constant 0 : i32
    return %c0_i32, %c0_i32_0 : i32, i32
  }
  func.func @transform_2(%arg0: i32) -> (i32, i32) {
    %c0_i32 = arith.constant 0 : i32
    %c0_i32_0 = arith.constant 0 : i32
    %c0_i32_1 = arith.constant 0 : i32
    return %c0_i32, %c0_i32_0 : i32, i32
  }
  func.func @transform_3(%arg0: i32) -> (i32, i32) {
    %c0_i32 = arith.constant 0 : i32
    %c0_i32_0 = arith.constant 0 : i32
    %c0_i32_1 = arith.constant 0 : i32
    return %c0_i32, %c0_i32_0 : i32, i32
  }
  func.func @transform_4(%arg0: i32) -> (i32, i32) {
    %c0_i32 = arith.constant 0 : i32
    %c0_i32_0 = arith.constant 0 : i32
    %c0_i32_1 = arith.constant 0 : i32
    return %c0_i32, %c0_i32_0 : i32, i32
  }
  func.func @transform_5(%arg0: i32) -> (i32, i32) {
    %c0_i32 = arith.constant 0 : i32
    %c0_i32_0 = arith.constant 0 : i32
    %c0_i32_1 = arith.constant 0 : i32
    return %c0_i32, %c0_i32_0 : i32, i32
  }
  func.func @transform_6(%arg0: i32) -> (i32, i32) {
    %c0_i32 = arith.constant 0 : i32
    %c0_i32_0 = arith.constant 0 : i32
    %c0_i32_1 = arith.constant 0 : i32
    return %c0_i32, %c0_i32_0 : i32, i32
  }
  func.func @transform_7(%arg0: i32) -> (i32, i32, i32) {
    %c0_i32 = arith.constant 0 : i32
    %c0_i32_0 = arith.constant 0 : i32
    %c0_i32_1 = arith.constant 0 : i32
    return %arg0, %c0_i32, %c0_i32_0 : i32, i32, i32
  }
}

</mosaic_0001>

<llo_original>
// kernel: image_classification_forward.1
$region0: #{image_classification_forward.1}
  #allocation0 [shape = 'u32[]', space=smem, size = 0x4, offset = 0x4, fixed_abs, tag = 'smem constant byte address 0x4 - core index']
  #allocation1 [shape = 'u32[144,128]{1,0:T(1,128)}', space=vmem, size = 0x12000, scoped, tag = 'internal scratch']
  %s0 = inlined_call_operand.vmem [shape: f32[2,16,128], index: 0, kind: input, shape index: {}]
  %s1 = inlined_call_operand.hbm [shape: bf16[384,128], index: 1, kind: input, shape index: {}]
  %s2 = inlined_call_operand.hbm [shape: f32[1,128], index: 2, kind: input, shape index: {}]
  %s3 = inlined_call_operand.vmem [shape: bf16[384,256], index: 3, kind: input, shape index: {}]
  %s4 = inlined_call_operand.hbm [shape: f32[1,256], index: 4, kind: input, shape index: {}]
  %s5 = inlined_call_operand.hbm [shape: f32[3072,128], index: 5, kind: input, shape index: {}]
  %s6 = inlined_call_operand.hbm [shape: f32[1,128], index: 6, kind: input, shape index: {}]
  %s7 = inlined_call_operand.vmem [shape: f32[2,1,128], index: 7, kind: output, shape index: {}]
  %s8 = sld [smem:[#allocation0]]
  $region81: #{image_classification_forward.1} parent=0
    _
  %s10 = ssub.s32 1, %s8
  %s11 = scalar_select 0, %s10, %s8
  $region1: #{image_classification_forward.1} parent=0
    #allocation2 [shape = 'u8[98304]{0}', space=vmem, size = 0x18000, scoped, tag = 'input window, operand 1, single buffered']
    #allocation3 [shape = 's32[2]{0}', space=sflag, size = 0x8, scoped, tag = 'scoped memory for image_classification_forward.1']
    #allocation4 [shape = 'u8[512]{0}', space=vmem, size = 0x400, scoped, tag = 'input window, operand 2, single buffered']
    #allocation5 [shape = 's32[1]{0}', space=sflag, size = 0x4, scoped, tag = 'scoped memory for image_classification_forward.1']
    #allocation6 [shape = 'u8[1024]{0}', space=vmem, size = 0x400, scoped, tag = 'input window, operand 4, single buffered']
    #allocation7 [shape = 'u8[1572864]{0}', space=vmem, size = 0x180000, scoped, tag = 'input window, operand 5, single buffered']
    #allocation8 [shape = 's32[1]{0}', space=sflag, size = 0x4, scoped, tag = 'scoped memory for image_classification_forward.1']
    #allocation9 [shape = 'u8[512]{0}', space=vmem, size = 0x400, scoped, tag = 'input window, operand 6, single buffered']
    %12 = vsyncpa [#allocation3], 0
    %13 = vsyncpa [#allocation5], 0
    %14 = vsyncpa [#allocation8], 0
    loop: start=0, step=1, limit=4
    $region2: #{image_classification_forward.1} parent=1 // loop_pre_header
      _
    $region3: #{image_classification_forward.1} parent=1 // loop_header
      %s16 = sphi 0, %s20
      %p17 = scmp.ge.s32.totalorder %s16, 4
      %s26 = sphi 0, %s28
      %s29 = sphi 0, %s26
      %s30 = sphi 0, %s29
      %s46 = sphi 0, %s30
      %s50 = sphi 0, %s50
      %s52 = sphi 0, %s50
      %s53 = sphi 0, %s52
      %s67 = sphi 0, %s53
      %s71 = sphi 0, %s71
      %s73 = sphi 0, %s71
      %s74 = sphi 0, %s73
      %s88 = sphi 0, %s74
      %s92 = sphi 0, %s92
      %s94 = sphi 0, %s92
      %s95 = sphi 0, %s94
      %s109 = sphi 0, %s95
      %s113 = sphi 0, %s113
      %s115 = sphi 0, %s113
      %s116 = sphi 0, %s115
      %s130 = sphi 0, %s116
      %s134 = sphi 0, %s134
      %s136 = sphi 0, %s134
      %s137 = sphi 0, %s136
      %s151 = sphi 0, %s137
      %s155 = sphi 0, %s155
      %s157 = sphi 0, %s155
      %s158 = sphi 0, %s157
      %s172 = sphi 0, %s158
      %s178 = sphi 0, %s180
      %s181 = sphi 0, %s178
      %s182 = sphi 0, %s181
      %s198 = sphi 0, %s182
    $region4: #{image_classification_forward.1} parent=1 // loop_header_branch
      %19 = sbr.rel (%p17) target = $region8
    $region5: #{image_classification_forward.1} parent=1 // loop_body
      %s21 = ssub.s32 %s16, 1
      %s22 = ssub.s32 %s16, 2
      %s23 = sadd.s32 %s16, 1
      %s24 = ssub.s32 %s16, %s23
      %p25 = scmp.eq.s32.totalorder %s24, 0
      %s27 = sadd.s32 %s26, 1
      %s28 = scalar_select %p25, %s26, %s27
      %p31 = pneg %p25
      %p32 = scmp.eq.s32.totalorder %s16, 1
      %p33 = por %p31, %p32
      %p34 = scmp.ne.s32.totalorder %s26, %s29
      %p35 = scmp.eq.s32.totalorder %s16, 0
      %p36 = por %p34, %p35
      %p37 = scmp.ne.s32.totalorder %s26, %s29
      %p38 = scmp.eq.s32.totalorder %s21, 1
      %p39 = por %p37, %p38
      %p40 = scmp.ne.s32.totalorder %s29, %s30
      %p41 = scmp.eq.s32.totalorder %s21, 0
      %p42 = por %p40, %p41
      %p43 = scmp.ne.s32.totalorder %s29, %s30
      %p44 = scmp.eq.s32.totalorder %s22, 1
      %p45 = por %p43, %p44
      %p47 = scmp.ne.s32.totalorder %s30, %s46
      %p48 = scmp.eq.s32.totalorder %s22, 0
      %p49 = por %p47, %p48
      %s51 = sadd.s32 %s50, 1
      %p54 = scmp.eq.s32.totalorder %s16, 1
      %p55 = scmp.ne.s32.totalorder %s50, %s52
      %p56 = scmp.eq.s32.totalorder %s16, 0
      %p57 = por %p55, %p56
      %p58 = scmp.ne.s32.totalorder %s50, %s52
      %p59 = scmp.eq.s32.totalorder %s21, 1
      %p60 = por %p58, %p59
      %p61 = scmp.ne.s32.totalorder %s52, %s53
      %p62 = scmp.eq.s32.totalorder %s21, 0
      %p63 = por %p61, %p62
      %p64 = scmp.ne.s32.totalorder %s52, %s53
      %p65 = scmp.eq.s32.totalorder %s22, 1
      %p66 = por %p64, %p65
      %p68 = scmp.ne.s32.totalorder %s53, %s67
      %p69 = scmp.eq.s32.totalorder %s22, 0
      %p70 = por %p68, %p69
      %s72 = sadd.s32 %s71, 1
      %p75 = scmp.eq.s32.totalorder %s16, 1
      %p76 = scmp.ne.s32.totalorder %s71, %s73
      %p77 = scmp.eq.s32.totalorder %s16, 0
      %p78 = por %p76, %p77
      %p79 = scmp.ne.s32.totalorder %s71, %s73
      %p80 = scmp.eq.s32.totalorder %s21, 1
      %p81 = por %p79, %p80
      %p82 = scmp.ne.s32.totalorder %s73, %s74
      %p83 = scmp.eq.s32.totalorder %s21, 0
      %p84 = por %p82, %p83
      %p85 = scmp.ne.s32.totalorder %s73, %s74
      %p86 = scmp.eq.s32.totalorder %s22, 1
      %p87 = por %p85, %p86
      %p89 = scmp.ne.s32.totalorder %s74, %s88
      %p90 = scmp.eq.s32.totalorder %s22, 0
      %p91 = por %p89, %p90
      %s93 = sadd.s32 %s92, 1
      %p96 = scmp.eq.s32.totalorder %s16, 1
      %p97 = scmp.ne.s32.totalorder %s92, %s94
      %p98 = scmp.eq.s32.totalorder %s16, 0
      %p99 = por %p97, %p98
      %p100 = scmp.ne.s32.totalorder %s92, %s94
      %p101 = scmp.eq.s32.totalorder %s21, 1
      %p102 = por %p100, %p101
      %p103 = scmp.ne.s32.totalorder %s94, %s95
      %p104 = scmp.eq.s32.totalorder %s21, 0
      %p105 = por %p103, %p104
      %p106 = scmp.ne.s32.totalorder %s94, %s95
      %p107 = scmp.eq.s32.totalorder %s22, 1
      %p108 = por %p106, %p107
      %p110 = scmp.ne.s32.totalorder %s95, %s109
      %p111 = scmp.eq.s32.totalorder %s22, 0
      %p112 = por %p110, %p111
      %s114 = sadd.s32 %s113, 1
      %p117 = scmp.eq.s32.totalorder %s16, 1
      %p118 = scmp.ne.s32.totalorder %s113, %s115
      %p119 = scmp.eq.s32.totalorder %s16, 0
      %p120 = por %p118, %p119
      %p121 = scmp.ne.s32.totalorder %s113, %s115
      %p122 = scmp.eq.s32.totalorder %s21, 1
      %p123 = por %p121, %p122
      %p124 = scmp.ne.s32.totalorder %s115, %s116
      %p125 = scmp.eq.s32.totalorder %s21, 0
      %p126 = por %p124, %p125
      %p127 = scmp.ne.s32.totalorder %s115, %s116
      %p128 = scmp.eq.s32.totalorder %s22, 1
      %p129 = por %p127, %p128
      %p131 = scmp.ne.s32.totalorder %s116, %s130
      %p132 = scmp.eq.s32.totalorder %s22, 0
      %p133 = por %p131, %p132
      %s135 = sadd.s32 %s134, 1
      %p138 = scmp.eq.s32.totalorder %s16, 1
      %p139 = scmp.ne.s32.totalorder %s134, %s136
      %p140 = scmp.eq.s32.totalorder %s16, 0
      %p141 = por %p139, %p140
      %p142 = scmp.ne.s32.totalorder %s134, %s136
      %p143 = scmp.eq.s32.totalorder %s21, 1
      %p144 = por %p142, %p143
      %p145 = scmp.ne.s32.totalorder %s136, %s137
      %p146 = scmp.eq.s32.totalorder %s21, 0
      %p147 = por %p145, %p146
      %p148 = scmp.ne.s32.totalorder %s136, %s137
      %p149 = scmp.eq.s32.totalorder %s22, 1
      %p150 = por %p148, %p149
      %p152 = scmp.ne.s32.totalorder %s137, %s151
      %p153 = scmp.eq.s32.totalorder %s22, 0
      %p154 = por %p152, %p153
      %s156 = sadd.s32 %s155, 1
      %p159 = scmp.eq.s32.totalorder %s16, 1
      %p160 = scmp.ne.s32.totalorder %s155, %s157
      %p161 = scmp.eq.s32.totalorder %s16, 0
      %p162 = por %p160, %p161
      %p163 = scmp.ne.s32.totalorder %s155, %s157
      %p164 = scmp.eq.s32.totalorder %s21, 1
      %p165 = por %p163, %p164
      %p166 = scmp.ne.s32.totalorder %s157, %s158
      %p167 = scmp.eq.s32.totalorder %s21, 0
      %p168 = por %p166, %p167
      %p169 = scmp.ne.s32.totalorder %s157, %s158
      %p170 = scmp.eq.s32.totalorder %s22, 1
      %p171 = por %p169, %p170
      %p173 = scmp.ne.s32.totalorder %s158, %s172
      %p174 = scmp.eq.s32.totalorder %s22, 0
      %p175 = por %p173, %p174
      %s176 = ssub.s32 %s16, %s23
      %p177 = scmp.eq.s32.totalorder %s176, 0
      %s179 = sadd.s32 %s178, 1
      %s180 = scalar_select %p177, %s178, %s179
      %p183 = pneg %p177
      %p184 = scmp.eq.s32.totalorder %s16, 1
      %p185 = por %p183, %p184
      %p186 = scmp.ne.s32.totalorder %s178, %s181
      %p187 = scmp.eq.s32.totalorder %s16, 0
      %p188 = por %p186, %p187
      %p189 = scmp.ne.s32.totalorder %s178, %s181
      %p190 = scmp.eq.s32.totalorder %s21, 1
      %p191 = por %p189, %p190
      %p192 = scmp.ne.s32.totalorder %s181, %s182
      %p193 = scmp.eq.s32.totalorder %s21, 0
      %p194 = por %p192, %p193
      %p195 = scmp.ne.s32.totalorder %s181, %s182
      %p196 = scmp.eq.s32.totalorder %s22, 1
      %p197 = por %p195, %p196
      %p199 = scmp.ne.s32.totalorder %s182, %s198
      %p200 = scmp.eq.s32.totalorder %s22, 0
      %p201 = por %p199, %p200
      %p202 = scmp.le.s32.totalorder 1, %s16
      %p203 = scmp.lt.s32.totalorder %s16, 3
      %p204 = pnand %p202, %p203
      %p205 = pneg %p204
      // Predicated region
      $region9: #{image_classification_forward.1} parent=5 // pred_check
        _
      $region10: #{image_classification_forward.1} parent=5 // pred_check_branch
        %207 = sbr.rel (%p204) target = $region12
      $region11: #{image_classification_forward.1} parent=5 // pred_region
        %s208 = ssub.s32 %s16, 1
        // Predicated region
        $region13: #{image_classification_forward.1} parent=11 // pred_check
          %p209 = pneg %p63
        $region14: #{image_classification_forward.1} parent=11 // pred_check_branch
          %211 = sbr.rel (%p209) target = $region16
        $region15: #{image_classification_forward.1} parent=11 // pred_region
          %s213 = ssub.s32 3072, 3072
          %214 = vsyncadd [#allocation3], %s213
          %s215 = sshll.u32 [#allocation2], 4
          %s216 = int_to_ptr.vmem [resolvable:$true] %s215
          %221 = dma.hbm_to_vmem [thread:$0]  %s1, 3072, %s216, [#allocation3], 64, 64, 4
        $region16: #{image_classification_forward.1} parent=11 // pred_fallthru
          _
        // Predicated region
        $region17: #{image_classification_forward.1} parent=11 // pred_check
          %p222 = pneg %p84
        $region18: #{image_classification_forward.1} parent=11 // pred_check_branch
          %224 = sbr.rel (%p222) target = $region20
        $region19: #{image_classification_forward.1} parent=11 // pred_region
          %s226 = ssub.s32 16, 16
          %227 = vsyncadd [#allocation5], %s226
          %s229 = sshll.u32 [#allocation4], 4
          %s230 = int_to_ptr.vmem [resolvable:$true] %s229
          %232 = dma.hbm_to_vmem [thread:$0]  %s2, 16, %s230, [#allocation5]
        $region20: #{image_classification_forward.1} parent=11 // pred_fallthru
          _
        // Predicated region
        $region21: #{image_classification_forward.1} parent=11 // pred_check
          %p233 = pneg %p105
        $region22: #{image_classification_forward.1} parent=11 // pred_check_branch
          %235 = sbr.rel (%p233) target = $region24
        $region23: #{image_classification_forward.1} parent=11 // pred_region
          _
        $region24: #{image_classification_forward.1} parent=11 // pred_fallthru
          _
        // Predicated region
        $region25: #{image_classification_forward.1} parent=11 // pred_check
          %p236 = pneg %p126
        $region26: #{image_classification_forward.1} parent=11 // pred_check_branch
          %238 = sbr.rel (%p236) target = $region28
        $region27: #{image_classification_forward.1} parent=11 // pred_region
          %s240 = ssub.s32 32, 32
          %241 = vsyncadd [#allocation5], %s240
          %s243 = sshll.u32 [#allocation6], 4
          %s244 = int_to_ptr.vmem [resolvable:$true] %s243
          %246 = dma.hbm_to_vmem [thread:$0]  %s4, 32, %s244, [#allocation5]
        $region28: #{image_classification_forward.1} parent=11 // pred_fallthru
          _
        // Predicated region
        $region29: #{image_classification_forward.1} parent=11 // pred_check
          %p247 = pneg %p147
        $region30: #{image_classification_forward.1} parent=11 // pred_check_branch
          %249 = sbr.rel (%p247) target = $region32
        $region31: #{image_classification_forward.1} parent=11 // pred_region
          %s251 = ssub.s32 49152, 49152
          %252 = vsyncadd [#allocation8], %s251
          %s253 = sshll.u32 [#allocation7], 4
          %s254 = int_to_ptr.vmem [resolvable:$true] %s253
          %259 = dma.hbm_to_vmem [thread:$0]  %s5, 49152, %s254, [#allocation8], 128, 128, 8
        $region32: #{image_classification_forward.1} parent=11 // pred_fallthru
          _
        // Predicated region
        $region33: #{image_classification_forward.1} parent=11 // pred_check
          %p260 = pneg %p168
        $region34: #{image_classification_forward.1} parent=11 // pred_check_branch
          %262 = sbr.rel (%p260) target = $region36
        $region35: #{image_classification_forward.1} parent=11 // pred_region
          %s264 = ssub.s32 16, 16
          %265 = vsyncadd [#allocation8], %s264
          %s267 = sshll.u32 [#allocation9], 4
          %s268 = int_to_ptr.vmem [resolvable:$true] %s267
          %270 = dma.hbm_to_vmem [thread:$0]  %s6, 16, %s268, [#allocation8]
        $region36: #{image_classification_forward.1} parent=11 // pred_fallthru
          _
      $region12: #{image_classification_forward.1} parent=5 // pred_fallthru
        _
      %p271 = scmp.lt.s32.totalorder %s16, 2
      // Predicated region
      $region37: #{image_classification_forward.1} parent=5 // pred_check
        %p272 = pneg %p271
      $region38: #{image_classification_forward.1} parent=5 // pred_check_branch
        %274 = sbr.rel (%p272) target = $region40
      $region39: #{image_classification_forward.1} parent=5 // pred_region
        // Predicated region
        $region41: #{image_classification_forward.1} parent=39 // pred_check
          %p275 = pneg %p36
        $region42: #{image_classification_forward.1} parent=39 // pred_check_branch
          %277 = sbr.rel (%p275) target = $region44
        $region43: #{image_classification_forward.1} parent=39 // pred_region
          %p278 = scmp.lt.s32.totalorder %s16, 1
          %s279 = scalar_select %p278, %s16, 1
          %s280 = smul.addr %s279, 2
          %s281 = smul.addr %s280, 8
          %s282 = scalar_lea.vmem %s0, %s281
        $region44: #{image_classification_forward.1} parent=39 // pred_fallthru
          _
      $region40: #{image_classification_forward.1} parent=5 // pred_fallthru
        _
      %p283 = scmp.le.s32.totalorder 1, %s16
      %p284 = scmp.lt.s32.totalorder %s16, 3
      %p285 = pnand %p283, %p284
      %p286 = pneg %p285
      // Predicated region
      $region45: #{image_classification_forward.1} parent=5 // pred_check
        _
      $region46: #{image_classification_forward.1} parent=5 // pred_check_branch
        %288 = sbr.rel (%p285) target = $region48
      $region47: #{image_classification_forward.1} parent=5 // pred_region
        %s289 = ssub.s32 %s16, 1
        // Predicated region
        $region49: #{image_classification_forward.1} parent=47 // pred_check
          %p290 = pneg %p63
        $region50: #{image_classification_forward.1} parent=47 // pred_check_branch
          %292 = sbr.rel (%p290) target = $region52
        $region51: #{image_classification_forward.1} parent=47 // pred_region
          %293 = dma.done [#allocation3], 3072
        $region52: #{image_classification_forward.1} parent=47 // pred_fallthru
          _
        // Predicated region
        $region53: #{image_classification_forward.1} parent=47 // pred_check
          %p294 = pneg %p84
        $region54: #{image_classification_forward.1} parent=47 // pred_check_branch
          %296 = sbr.rel (%p294) target = $region56
        $region55: #{image_classification_forward.1} parent=47 // pred_region
          %297 = dma.done [#allocation5], 16
        $region56: #{image_classification_forward.1} parent=47 // pred_fallthru
          _
        // Predicated region
        $region57: #{image_classification_forward.1} parent=47 // pred_check
          %p298 = pneg %p126
        $region58: #{image_classification_forward.1} parent=47 // pred_check_branch
          %300 = sbr.rel (%p298) target = $region60
        $region59: #{image_classification_forward.1} parent=47 // pred_region
          %301 = dma.done [#allocation5], 32
        $region60: #{image_classification_forward.1} parent=47 // pred_fallthru
          _
        // Predicated region
        $region61: #{image_classification_forward.1} parent=47 // pred_check
          %p302 = pneg %p147
        $region62: #{image_classification_forward.1} parent=47 // pred_check_branch
          %304 = sbr.rel (%p302) target = $region64
        $region63: #{image_classification_forward.1} parent=47 // pred_region
          %305 = dma.done [#allocation8], 49152
        $region64: #{image_classification_forward.1} parent=47 // pred_fallthru
          _
        // Predicated region
        $region65: #{image_classification_forward.1} parent=47 // pred_check
          %p306 = pneg %p168
        $region66: #{image_classification_forward.1} parent=47 // pred_check_branch
          %308 = sbr.rel (%p306) target = $region68
        $region67: #{image_classification_forward.1} parent=47 // pred_region
          %309 = dma.done [#allocation8], 16
        $region68: #{image_classification_forward.1} parent=47 // pred_fallthru
          _
        %p310 = scmp.lt.s32.totalorder %s21, 1
        %s311 = scalar_select %p310, %s21, 1
        %s312 = smul.addr %s311, 2
        %s313 = smul.addr %s312, 8
        %s314 = scalar_lea.vmem %s0, %s313
        %p315 = pneg %p42
        %p316 = pneg %p39
        %p317 = pneg %p63
        %p318 = pneg %p60
        %p319 = pneg %p84
        %p320 = pneg %p81
        %p321 = pneg %p105
        %p322 = pneg %p102
        %p323 = pneg %p126
        %p324 = pneg %p123
        %p325 = pneg %p147
        %p326 = pneg %p144
        %p327 = pneg %p168
        %p328 = pneg %p165
        %p329 = pneg %p194
        %p330 = pneg %p191
        %p331 = scmp.lt.s32.totalorder %s21, 1
        %s332 = scalar_select %p331, %s21, 1
        %s333 = scalar_lea.vmem %s7, %s332
        %p334 = scmp.lt.s32.totalorder %s21, 1
        %s335 = scalar_select %p334, %s21, 1
        %s336 = smul.addr %s335, 2
        %s337 = smul.addr %s336, 8
        %s338 = scalar_lea.vmem %s0, %s337
        %p339 = scmp.lt.s32.totalorder %s21, 1
        %s340 = scalar_select %p339, %s21, 1
        %s341 = scalar_lea.vmem %s7, %s340
        %v343 = vld [vmem:[%s338] sm:$0xff]
        %v344 = vld [vmem:[%s338 + $0x8] sm:$0xff]
        %vm347 = vcmask 1046528
        %v348 = vrot.slane %v343, 1
        %v349 = vrot.slane %v344, 1
        %v350 = vsel %vm347, %v348, %v349
        %vm353 = vcmask 1045504
        %v354 = vrot.slane %v343, 2
        %v355 = vrot.slane %v344, 2
        %v356 = vsel %vm353, %v354, %v355
        %v359 = vpack.c.bf16 %v344, %v343
        %v360 = vpack.c.bf16 %v349, %v350
        %v361 = vpack.c.bf16 %v355, %v356
        %v362 = vld [vmem:[#allocation2] sm:$0xf]
        %v363 = vld [vmem:[#allocation2 + $0x4] sm:$0xf]
        %v364 = vld [vmem:[#allocation2 + $0x8] sm:$0xf]
        %v365 = vld [vmem:[#allocation2 + $0xc] sm:$0xf]
        %v366 = vld [vmem:[#allocation2 + $0x10] sm:$0xf]
        %v367 = vld [vmem:[#allocation2 + $0x14] sm:$0xf]
        %v368 = vld [vmem:[#allocation2 + $0x18] sm:$0xf]
        %v369 = vld [vmem:[#allocation2 + $0x1c] sm:$0xf]
        %v370 = vld [vmem:[#allocation2 + $0x20] sm:$0xf]
        %v371 = vld [vmem:[#allocation2 + $0x24] sm:$0xf]
        %v372 = vld [vmem:[#allocation2 + $0x28] sm:$0xf]
        %v373 = vld [vmem:[#allocation2 + $0x2c] sm:$0xf]
        %v374 = vld [vmem:[#allocation2 + $0x30] sm:$0xf]
        %v375 = vld [vmem:[#allocation2 + $0x34] sm:$0xf]
        %v376 = vld [vmem:[#allocation2 + $0x38] sm:$0xf]
        %v377 = vld [vmem:[#allocation2 + $0x3c] sm:$0xf]
        %v378 = vld [vmem:[#allocation2 + $0x40] sm:$0xf]
        %v379 = vld [vmem:[#allocation2 + $0x44] sm:$0xf]
        %v380 = vld [vmem:[#allocation2 + $0x48] sm:$0xf]
        %v381 = vld [vmem:[#allocation2 + $0x4c] sm:$0xf]
        %v382 = vld [vmem:[#allocation2 + $0x50] sm:$0xf]
        %v383 = vld [vmem:[#allocation2 + $0x54] sm:$0xf]
        %v384 = vld [vmem:[#allocation2 + $0x58] sm:$0xf]
        %v385 = vld [vmem:[#allocation2 + $0x5c] sm:$0xf]
        %v386 = vld [vmem:[#allocation2 + $0x60] sm:$0xf]
        %v387 = vld [vmem:[#allocation2 + $0x64] sm:$0xf]
        %v388 = vld [vmem:[#allocation2 + $0x68] sm:$0xf]
        %v389 = vld [vmem:[#allocation2 + $0x6c] sm:$0xf]
        %v390 = vld [vmem:[#allocation2 + $0x70] sm:$0xf]
        %v391 = vld [vmem:[#allocation2 + $0x74] sm:$0xf]
        %v392 = vld [vmem:[#allocation2 + $0x78] sm:$0xf]
        %v393 = vld [vmem:[#allocation2 + $0x7c] sm:$0xf]
        %v394 = vld [vmem:[#allocation2 + $0x80] sm:$0xf]
        %v395 = vld [vmem:[#allocation2 + $0x84] sm:$0xf]
        %v396 = vld [vmem:[#allocation2 + $0x88] sm:$0xf]
        %v397 = vld [vmem:[#allocation2 + $0x8c] sm:$0xf]
        %v398 = vld [vmem:[#allocation2 + $0x90] sm:$0xf]
        %v399 = vld [vmem:[#allocation2 + $0x94] sm:$0xf]
        %v400 = vld [vmem:[#allocation2 + $0x98] sm:$0xf]
        %v401 = vld [vmem:[#allocation2 + $0x9c] sm:$0xf]
        %v402 = vld [vmem:[#allocation2 + $0xa0] sm:$0xf]
        %v403 = vld [vmem:[#allocation2 + $0xa4] sm:$0xf]
        %v404 = vld [vmem:[#allocation2 + $0xa8] sm:$0xf]
        %v405 = vld [vmem:[#allocation2 + $0xac] sm:$0xf]
        %v406 = vld [vmem:[#allocation2 + $0xb0] sm:$0xf]
        %v407 = vld [vmem:[#allocation2 + $0xb4] sm:$0xf]
        %v408 = vld [vmem:[#allocation2 + $0xb8] sm:$0xf]
        %v409 = vld [vmem:[#allocation2 + $0xbc] sm:$0xf]
        %v410 = vld [vmem:[#allocation4] sm:$0x1]
        %v412 = vlaneseq
        %v413 = vshrl.u32 %v412, 7
        %v414 = vsub.s32 0, %v413
        %v415 = vrot.slane %v410, %v414
        %v465 = vunpack.c.l.b16 %v362
        %v466 = vunpack.c.l.b16 %v363
        %v467 = vunpack.c.l.b16 %v364
        %v468 = vunpack.c.l.b16 %v365
        %v469 = vunpack.c.l.b16 %v366
        %v470 = vunpack.c.l.b16 %v367
        %v471 = vunpack.c.l.b16 %v368
        %v472 = vunpack.c.l.b16 %v369
        %v473 = vunpack.c.l.b16 %v370
        %v474 = vunpack.c.l.b16 %v371
        %v475 = vunpack.c.l.b16 %v372
        %v476 = vunpack.c.l.b16 %v373
        %v477 = vunpack.c.l.b16 %v374
        %v478 = vunpack.c.l.b16 %v375
        %v479 = vunpack.c.l.b16 %v376
        %v480 = vunpack.c.l.b16 %v377
        %v481 = vunpack.c.l.b16 %v378
        %v482 = vunpack.c.l.b16 %v379
        %v483 = vunpack.c.l.b16 %v380
        %v484 = vunpack.c.l.b16 %v381
        %v485 = vunpack.c.l.b16 %v382
        %v486 = vunpack.c.l.b16 %v383
        %v487 = vunpack.c.l.b16 %v384
        %v488 = vunpack.c.l.b16 %v385
        %v489 = vunpack.c.l.b16 %v386
        %v490 = vunpack.c.l.b16 %v387
        %v491 = vunpack.c.l.b16 %v388
        %v492 = vunpack.c.l.b16 %v389
        %v493 = vunpack.c.l.b16 %v390
        %v494 = vunpack.c.l.b16 %v391
        %v495 = vunpack.c.l.b16 %v392
        %v496 = vunpack.c.l.b16 %v393
        %v497 = vunpack.c.l.b16 %v394
        %v498 = vunpack.c.l.b16 %v395
        %v499 = vunpack.c.l.b16 %v396
        %v500 = vunpack.c.l.b16 %v397
        %v501 = vunpack.c.l.b16 %v398
        %v502 = vunpack.c.l.b16 %v399
        %v503 = vunpack.c.l.b16 %v400
        %v504 = vunpack.c.l.b16 %v401
        %v505 = vunpack.c.l.b16 %v402
        %v506 = vunpack.c.l.b16 %v403
        %v507 = vunpack.c.l.b16 %v404
        %v508 = vunpack.c.l.b16 %v405
        %v509 = vunpack.c.l.b16 %v406
        %v510 = vunpack.c.l.b16 %v407
        %v511 = vunpack.c.l.b16 %v408
        %v512 = vunpack.c.l.b16 %v409
        %v513 = vpack.c.b16 %v466, %v465
        %v514 = vpack.c.b16 %v468, %v467
        %v515 = vpack.c.b16 %v470, %v469
        %v516 = vpack.c.b16 %v472, %v471
        %v517 = vpack.c.b16 %v474, %v473
        %v518 = vpack.c.b16 %v476, %v475
        %v519 = vpack.c.b16 %v478, %v477
        %v520 = vpack.c.b16 %v480, %v479
        %v521 = vpack.c.b16 %v482, %v481
        %v522 = vpack.c.b16 %v484, %v483
        %v523 = vpack.c.b16 %v486, %v485
        %v524 = vpack.c.b16 %v488, %v487
        %v525 = vpack.c.b16 %v490, %v489
        %v526 = vpack.c.b16 %v492, %v491
        %v527 = vpack.c.b16 %v494, %v493
        %v528 = vpack.c.b16 %v496, %v495
        %v529 = vpack.c.b16 %v498, %v497
        %v530 = vpack.c.b16 %v500, %v499
        %v531 = vpack.c.b16 %v502, %v501
        %v532 = vpack.c.b16 %v504, %v503
        %v533 = vpack.c.b16 %v506, %v505
        %v534 = vpack.c.b16 %v508, %v507
        %v535 = vpack.c.b16 %v510, %v509
        %v536 = vpack.c.b16 %v512, %v511
        %561 = vmatprep.subr.bf16.mxu0 0
        %562 = vmatpush1.bf16.msra.mxu0 %v513
        %563 = vmatprep.subr.bf16.mxu0 0
        %564 = vmatpush1.bf16.msra.mxu0 %v514
        %565 = vmatprep.subr.bf16.mxu0 0
        %566 = vmatpush1.bf16.msra.mxu0 %v515
        %567 = vmatprep.subr.bf16.mxu0 0
        %568 = vmatpush1.bf16.msra.mxu0 %v516
        %569 = vmatprep.subr.bf16.mxu0 0
        %570 = vmatpush1.bf16.msra.mxu0 %v517
        %571 = vmatprep.subr.bf16.mxu0 0
        %572 = vmatpush1.bf16.msra.mxu0 %v518
        %573 = vmatprep.subr.bf16.mxu0 0
        %574 = vmatpush1.bf16.msra.mxu0 %v519
        %575 = vmatprep.subr.bf16.mxu0 0
        %576 = vmatpush1.bf16.msra.mxu0 %v520
        %577 = vmatprep.subr.bf16.mxu0 0
        %578 = vmatpush1.bf16.msra.mxu0 %v521
        %579 = vmatprep.subr.bf16.mxu0 0
        %580 = vmatpush1.bf16.msra.mxu0 %v522
        %581 = vmatprep.subr.bf16.mxu0 0
        %582 = vmatpush1.bf16.msra.mxu0 %v523
        %583 = vmatprep.subr.bf16.mxu0 0
        %584 = vmatpush1.bf16.msra.mxu0 %v524
        %585 = vmatprep.subr.bf16.mxu0 0
        %586 = vmatpush1.bf16.msra.mxu0 %v525
        %587 = vmatprep.subr.bf16.mxu0 0
        %588 = vmatpush1.bf16.msra.mxu0 %v526
        %589 = vmatprep.subr.bf16.mxu0 0
        %590 = vmatpush1.bf16.msra.mxu0 %v527
        %591 = vmatprep.subr.bf16.mxu0 0
        %592 = vmatpush1.bf16.msra.mxu0 %v528
        %593 = vmatprep.mubr.bf16.mxu0 %v360
        %594 = vmatmul.mubr.bf16.gmra.mrb[0].mxu0 %v359
        %v595 = vpop.f32.mrb[0].mxu0
        %v596 = vadd.f32 %v415, %v595
        %v597 = vpop.f32.mrb[0].mxu0
        %v598 = vpop.f32.mrb[0].mxu0
        %v599 = vadd.f32 %v415, %v598
        %v600 = vpop.f32.mrb[0].mxu0
        %601 = vdwg.mxu0
        %602 = vmatprep.subr.bf16.mxu0 0
        %603 = vmatpush1.bf16.msra.mxu0 %v529
        %604 = vmatprep.subr.bf16.mxu0 0
        %605 = vmatpush1.bf16.msra.mxu0 %v530
        %606 = vmatprep.subr.bf16.mxu0 0
        %607 = vmatpush1.bf16.msra.mxu0 %v531
        %608 = vmatprep.subr.bf16.mxu0 0
        %609 = vmatpush1.bf16.msra.mxu0 %v532
        %610 = vmatprep.subr.bf16.mxu0 0
        %611 = vmatpush1.bf16.msra.mxu0 %v533
        %612 = vmatprep.subr.bf16.mxu0 0
        %613 = vmatpush1.bf16.msra.mxu0 %v534
        %614 = vmatprep.subr.bf16.mxu0 0
        %615 = vmatpush1.bf16.msra.mxu0 %v535
        %616 = vmatprep.subr.bf16.mxu0 0
        %617 = vmatpush1.bf16.msra.mxu0 %v536
        %618 = vmatprep.subr.bf16.mxu0 0
        %619 = vmatpush1.bf16.msra.mxu0 0
        %620 = vmatprep.subr.bf16.mxu0 0
        %621 = vmatpush1.bf16.msra.mxu0 0
        %622 = vmatprep.subr.bf16.mxu0 0
        %623 = vmatpush1.bf16.msra.mxu0 0
        %624 = vmatprep.subr.bf16.mxu0 0
        %625 = vmatpush1.bf16.msra.mxu0 0
        %626 = vmatprep.subr.bf16.mxu0 0
        %627 = vmatpush1.bf16.msra.mxu0 0
        %628 = vmatprep.subr.bf16.mxu0 0
        %629 = vmatpush1.bf16.msra.mxu0 0
        %630 = vmatprep.subr.bf16.mxu0 0
        %631 = vmatpush1.bf16.msra.mxu0 0
        %632 = vmatprep.subr.bf16.mxu0 0
        %633 = vmatpush1.bf16.msra.mxu0 0
        %634 = vmatprep.mubr.bf16.mxu0 0
        %635 = vmatmul.mubr.bf16.gmra.mrb[0].mxu0 %v361
        %v636 = vpop.f32.mrb[0].mxu0
        %v637 = vadd.f32 %v596, %v636
        %v638 = vpop.f32.mrb[0].mxu0
        %v639 = vpop.f32.mrb[0].mxu0
        %v640 = vadd.f32 %v599, %v639
        %v641 = vpop.f32.mrb[0].mxu0
        %642 = vdwg.mxu0
        %v643 = vmax.f32 %v637, 0.0
        %v644 = vmax.f32 %v640, 0.0
        %v647 = vrot.slane %v643, 1
        %v648 = vrot.slane %v644, 1
        %v649 = vsel %vm347, %v647, %v648
        %v652 = vrot.slane %v643, 2
        %v653 = vrot.slane %v644, 2
        %v654 = vsel %vm353, %v652, %v653
        %v657 = vpack.c.bf16 %v644, %v643
        %v658 = vpack.c.bf16 %v648, %v649
        %v659 = vpack.c.bf16 %v653, %v654
        %v660 = vld [vmem:[%s3] sm:$0xff]
        %v661 = vld [vmem:[%s3 + $0x8] sm:$0xff]
        %v662 = vld [vmem:[%s3 + $0x10] sm:$0xff]
        %v663 = vld [vmem:[%s3 + $0x18] sm:$0xff]
        %v664 = vld [vmem:[%s3 + $0x20] sm:$0xff]
        %v665 = vld [vmem:[%s3 + $0x28] sm:$0xff]
        %v666 = vld [vmem:[%s3 + $0x30] sm:$0xff]
        %v667 = vld [vmem:[%s3 + $0x38] sm:$0xff]
        %v668 = vld [vmem:[%s3 + $0x40] sm:$0xff]
        %v669 = vld [vmem:[%s3 + $0x48] sm:$0xff]
        %v670 = vld [vmem:[%s3 + $0x50] sm:$0xff]
        %v671 = vld [vmem:[%s3 + $0x58] sm:$0xff]
        %v672 = vld [vmem:[%s3 + $0x60] sm:$0xff]
        %v673 = vld [vmem:[%s3 + $0x68] sm:$0xff]
        %v674 = vld [vmem:[%s3 + $0x70] sm:$0xff]
        %v675 = vld [vmem:[%s3 + $0x78] sm:$0xff]
        %v676 = vld [vmem:[%s3 + $0x80] sm:$0xff]
        %v677 = vld [vmem:[%s3 + $0x88] sm:$0xff]
        %v678 = vld [vmem:[%s3 + $0x90] sm:$0xff]
        %v679 = vld [vmem:[%s3 + $0x98] sm:$0xff]
        %v680 = vld [vmem:[%s3 + $0xa0] sm:$0xff]
        %v681 = vld [vmem:[%s3 + $0xa8] sm:$0xff]
        %v682 = vld [vmem:[%s3 + $0xb0] sm:$0xff]
        %v683 = vld [vmem:[%s3 + $0xb8] sm:$0xff]
        %v684 = vld [vmem:[%s3 + $0xc0] sm:$0xff]
        %v685 = vld [vmem:[%s3 + $0xc8] sm:$0xff]
        %v686 = vld [vmem:[%s3 + $0xd0] sm:$0xff]
        %v687 = vld [vmem:[%s3 + $0xd8] sm:$0xff]
        %v688 = vld [vmem:[%s3 + $0xe0] sm:$0xff]
        %v689 = vld [vmem:[%s3 + $0xe8] sm:$0xff]
        %v690 = vld [vmem:[%s3 + $0xf0] sm:$0xff]
        %v691 = vld [vmem:[%s3 + $0xf8] sm:$0xff]
        %v692 = vld [vmem:[%s3 + $0x100] sm:$0xff]
        %v693 = vld [vmem:[%s3 + $0x108] sm:$0xff]
        %v694 = vld [vmem:[%s3 + $0x110] sm:$0xff]
        %v695 = vld [vmem:[%s3 + $0x118] sm:$0xff]
        %v696 = vld [vmem:[%s3 + $0x120] sm:$0xff]
        %v697 = vld [vmem:[%s3 + $0x128] sm:$0xff]
        %v698 = vld [vmem:[%s3 + $0x130] sm:$0xff]
        %v699 = vld [vmem:[%s3 + $0x138] sm:$0xff]
        %v700 = vld [vmem:[%s3 + $0x140] sm:$0xff]
        %v701 = vld [vmem:[%s3 + $0x148] sm:$0xff]
        %v702 = vld [vmem:[%s3 + $0x150] sm:$0xff]
        %v703 = vld [vmem:[%s3 + $0x158] sm:$0xff]
        %v704 = vld [vmem:[%s3 + $0x160] sm:$0xff]
        %v705 = vld [vmem:[%s3 + $0x168] sm:$0xff]
        %v706 = vld [vmem:[%s3 + $0x170] sm:$0xff]
        %v707 = vld [vmem:[%s3 + $0x178] sm:$0xff]
        %v708 = vld [vmem:[#allocation6] sm:$0x3]
        %v710 = vlaneseq
        %v711 = vshrl.u32 %v710, 7
        %v712 = vsub.s32 0, %v711
        %v713 = vrot.slane %v708, %v712
        %v714 = vlaneseq
        %v715 = vshrl.u32 %v714, 7
        %v716 = vsub.s32 1, %v715
        %v717 = vrot.slane %v708, %v716
        %v768 = vunpack.c.l.b16 %v660
        %v769 = vunpack.c.h.b16 %v660
        %v770 = vunpack.c.l.b16 %v661
        %v771 = vunpack.c.h.b16 %v661
        %v772 = vunpack.c.l.b16 %v662
        %v773 = vunpack.c.h.b16 %v662
        %v774 = vunpack.c.l.b16 %v663
        %v775 = vunpack.c.h.b16 %v663
        %v776 = vunpack.c.l.b16 %v664
        %v777 = vunpack.c.h.b16 %v664
        %v778 = vunpack.c.l.b16 %v665
        %v779 = vunpack.c.h.b16 %v665
        %v780 = vunpack.c.l.b16 %v666
        %v781 = vunpack.c.h.b16 %v666
        %v782 = vunpack.c.l.b16 %v667
        %v783 = vunpack.c.h.b16 %v667
        %v784 = vunpack.c.l.b16 %v668
        %v785 = vunpack.c.h.b16 %v668
        %v786 = vunpack.c.l.b16 %v669
        %v787 = vunpack.c.h.b16 %v669
        %v788 = vunpack.c.l.b16 %v670
        %v789 = vunpack.c.h.b16 %v670
        %v790 = vunpack.c.l.b16 %v671
        %v791 = vunpack.c.h.b16 %v671
        %v792 = vunpack.c.l.b16 %v672
        %v793 = vunpack.c.h.b16 %v672
        %v794 = vunpack.c.l.b16 %v673
        %v795 = vunpack.c.h.b16 %v673
        %v796 = vunpack.c.l.b16 %v674
        %v797 = vunpack.c.h.b16 %v674
        %v798 = vunpack.c.l.b16 %v675
        %v799 = vunpack.c.h.b16 %v675
        %v800 = vunpack.c.l.b16 %v676
        %v801 = vunpack.c.h.b16 %v676
        %v802 = vunpack.c.l.b16 %v677
        %v803 = vunpack.c.h.b16 %v677
        %v804 = vunpack.c.l.b16 %v678
        %v805 = vunpack.c.h.b16 %v678
        %v806 = vunpack.c.l.b16 %v679
        %v807 = vunpack.c.h.b16 %v679
        %v808 = vunpack.c.l.b16 %v680
        %v809 = vunpack.c.h.b16 %v680
        %v810 = vunpack.c.l.b16 %v681
        %v811 = vunpack.c.h.b16 %v681
        %v812 = vunpack.c.l.b16 %v682
        %v813 = vunpack.c.h.b16 %v682
        %v814 = vunpack.c.l.b16 %v683
        %v815 = vunpack.c.h.b16 %v683
        %v816 = vunpack.c.l.b16 %v684
        %v817 = vunpack.c.h.b16 %v684
        %v818 = vunpack.c.l.b16 %v685
        %v819 = vunpack.c.h.b16 %v685
        %v820 = vunpack.c.l.b16 %v686
        %v821 = vunpack.c.h.b16 %v686
        %v822 = vunpack.c.l.b16 %v687
        %v823 = vunpack.c.h.b16 %v687
        %v824 = vunpack.c.l.b16 %v688
        %v825 = vunpack.c.h.b16 %v688
        %v826 = vunpack.c.l.b16 %v689
        %v827 = vunpack.c.h.b16 %v689
        %v828 = vunpack.c.l.b16 %v690
        %v829 = vunpack.c.h.b16 %v690
        %v830 = vunpack.c.l.b16 %v691
        %v831 = vunpack.c.h.b16 %v691
        %v832 = vunpack.c.l.b16 %v692
        %v833 = vunpack.c.h.b16 %v692
        %v834 = vunpack.c.l.b16 %v693
        %v835 = vunpack.c.h.b16 %v693
        %v836 = vunpack.c.l.b16 %v694
        %v837 = vunpack.c.h.b16 %v694
        %v838 = vunpack.c.l.b16 %v695
        %v839 = vunpack.c.h.b16 %v695
        %v840 = vunpack.c.l.b16 %v696
        %v841 = vunpack.c.h.b16 %v696
        %v842 = vunpack.c.l.b16 %v697
        %v843 = vunpack.c.h.b16 %v697
        %v844 = vunpack.c.l.b16 %v698
        %v845 = vunpack.c.h.b16 %v698
        %v846 = vunpack.c.l.b16 %v699
        %v847 = vunpack.c.h.b16 %v699
        %v848 = vunpack.c.l.b16 %v700
        %v849 = vunpack.c.h.b16 %v700
        %v850 = vunpack.c.l.b16 %v701
        %v851 = vunpack.c.h.b16 %v701
        %v852 = vunpack.c.l.b16 %v702
        %v853 = vunpack.c.h.b16 %v702
        %v854 = vunpack.c.l.b16 %v703
        %v855 = vunpack.c.h.b16 %v703
        %v856 = vunpack.c.l.b16 %v704
        %v857 = vunpack.c.h.b16 %v704
        %v858 = vunpack.c.l.b16 %v705
        %v859 = vunpack.c.h.b16 %v705
        %v860 = vunpack.c.l.b16 %v706
        %v861 = vunpack.c.h.b16 %v706
        %v862 = vunpack.c.l.b16 %v707
        %v863 = vunpack.c.h.b16 %v707
        %v864 = vpack.c.b16 %v770, %v768
        %v865 = vpack.c.b16 %v771, %v769
        %v866 = vpack.c.b16 %v774, %v772
        %v867 = vpack.c.b16 %v775, %v773
        %v868 = vpack.c.b16 %v778, %v776
        %v869 = vpack.c.b16 %v779, %v777
        %v870 = vpack.c.b16 %v782, %v780
        %v871 = vpack.c.b16 %v783, %v781
        %v872 = vpack.c.b16 %v786, %v784
        %v873 = vpack.c.b16 %v787, %v785
        %v874 = vpack.c.b16 %v790, %v788
        %v875 = vpack.c.b16 %v791, %v789
        %v876 = vpack.c.b16 %v794, %v792
        %v877 = vpack.c.b16 %v795, %v793
        %v878 = vpack.c.b16 %v798, %v796
        %v879 = vpack.c.b16 %v799, %v797
        %v880 = vpack.c.b16 %v802, %v800
        %v881 = vpack.c.b16 %v803, %v801
        %v882 = vpack.c.b16 %v806, %v804
        %v883 = vpack.c.b16 %v807, %v805
        %v884 = vpack.c.b16 %v810, %v808
        %v885 = vpack.c.b16 %v811, %v809
        %v886 = vpack.c.b16 %v814, %v812
        %v887 = vpack.c.b16 %v815, %v813
        %v888 = vpack.c.b16 %v818, %v816
        %v889 = vpack.c.b16 %v819, %v817
        %v890 = vpack.c.b16 %v822, %v820
        %v891 = vpack.c.b16 %v823, %v821
        %v892 = vpack.c.b16 %v826, %v824
        %v893 = vpack.c.b16 %v827, %v825
        %v894 = vpack.c.b16 %v830, %v828
        %v895 = vpack.c.b16 %v831, %v829
        %v896 = vpack.c.b16 %v834, %v832
        %v897 = vpack.c.b16 %v835, %v833
        %v898 = vpack.c.b16 %v838, %v836
        %v899 = vpack.c.b16 %v839, %v837
        %v900 = vpack.c.b16 %v842, %v840
        %v901 = vpack.c.b16 %v843, %v841
        %v902 = vpack.c.b16 %v846, %v844
        %v903 = vpack.c.b16 %v847, %v845
        %v904 = vpack.c.b16 %v850, %v848
        %v905 = vpack.c.b16 %v851, %v849
        %v906 = vpack.c.b16 %v854, %v852
        %v907 = vpack.c.b16 %v855, %v853
        %v908 = vpack.c.b16 %v858, %v856
        %v909 = vpack.c.b16 %v859, %v857
        %v910 = vpack.c.b16 %v862, %v860
        %v911 = vpack.c.b16 %v863, %v861
        %960 = vmatprep.subr.bf16.mxu0 %v865
        %961 = vmatpush1.bf16.msra.mxu0 %v864
        %962 = vmatprep.subr.bf16.mxu0 %v867
        %963 = vmatpush1.bf16.msra.mxu0 %v866
        %964 = vmatprep.subr.bf16.mxu0 %v869
        %965 = vmatpush1.bf16.msra.mxu0 %v868
        %966 = vmatprep.subr.bf16.mxu0 %v871
        %967 = vmatpush1.bf16.msra.mxu0 %v870
        %968 = vmatprep.subr.bf16.mxu0 %v873
        %969 = vmatpush1.bf16.msra.mxu0 %v872
        %970 = vmatprep.subr.bf16.mxu0 %v875
        %971 = vmatpush1.bf16.msra.mxu0 %v874
        %972 = vmatprep.subr.bf16.mxu0 %v877
        %973 = vmatpush1.bf16.msra.mxu0 %v876
        %974 = vmatprep.subr.bf16.mxu0 %v879
        %975 = vmatpush1.bf16.msra.mxu0 %v878
        %976 = vmatprep.subr.bf16.mxu0 %v881
        %977 = vmatpush1.bf16.msra.mxu0 %v880
        %978 = vmatprep.subr.bf16.mxu0 %v883
        %979 = vmatpush1.bf16.msra.mxu0 %v882
        %980 = vmatprep.subr.bf16.mxu0 %v885
        %981 = vmatpush1.bf16.msra.mxu0 %v884
        %982 = vmatprep.subr.bf16.mxu0 %v887
        %983 = vmatpush1.bf16.msra.mxu0 %v886
        %984 = vmatprep.subr.bf16.mxu0 %v889
        %985 = vmatpush1.bf16.msra.mxu0 %v888
        %986 = vmatprep.subr.bf16.mxu0 %v891
        %987 = vmatpush1.bf16.msra.mxu0 %v890
        %988 = vmatprep.subr.bf16.mxu0 %v893
        %989 = vmatpush1.bf16.msra.mxu0 %v892
        %990 = vmatprep.subr.bf16.mxu0 %v895
        %991 = vmatpush1.bf16.msra.mxu0 %v894
        %992 = vmatprep.mubr.bf16.mxu0 %v658
        %993 = vmatmul.mubr.bf16.gmra.mrb[0].mxu0 %v657
        %v994 = vpop.f32.mrb[0].mxu0
        %v995 = vadd.f32 %v713, %v994
        %v996 = vpop.f32.mrb[0].mxu0
        %v997 = vadd.f32 %v717, %v996
        %v998 = vpop.f32.mrb[0].mxu0
        %v999 = vadd.f32 %v713, %v998
        %v1000 = vpop.f32.mrb[0].mxu0
        %v1001 = vadd.f32 %v717, %v1000
        %1002 = vdwg.mxu0
        %1003 = vmatprep.subr.bf16.mxu0 %v897
        %1004 = vmatpush1.bf16.msra.mxu0 %v896
        %1005 = vmatprep.subr.bf16.mxu0 %v899
        %1006 = vmatpush1.bf16.msra.mxu0 %v898
        %1007 = vmatprep.subr.bf16.mxu0 %v901
        %1008 = vmatpush1.bf16.msra.mxu0 %v900
        %1009 = vmatprep.subr.bf16.mxu0 %v903
        %1010 = vmatpush1.bf16.msra.mxu0 %v902
        %1011 = vmatprep.subr.bf16.mxu0 %v905
        %1012 = vmatpush1.bf16.msra.mxu0 %v904
        %1013 = vmatprep.subr.bf16.mxu0 %v907
        %1014 = vmatpush1.bf16.msra.mxu0 %v906
        %1015 = vmatprep.subr.bf16.mxu0 %v909
        %1016 = vmatpush1.bf16.msra.mxu0 %v908
        %1017 = vmatprep.subr.bf16.mxu0 %v911
        %1018 = vmatpush1.bf16.msra.mxu0 %v910
        %1019 = vmatprep.subr.bf16.mxu0 0
        %1020 = vmatpush1.bf16.msra.mxu0 0
        %1021 = vmatprep.subr.bf16.mxu0 0
        %1022 = vmatpush1.bf16.msra.mxu0 0
        %1023 = vmatprep.subr.bf16.mxu0 0
        %1024 = vmatpush1.bf16.msra.mxu0 0
        %1025 = vmatprep.subr.bf16.mxu0 0
        %1026 = vmatpush1.bf16.msra.mxu0 0
        %1027 = vmatprep.subr.bf16.mxu0 0
        %1028 = vmatpush1.bf16.msra.mxu0 0
        %1029 = vmatprep.subr.bf16.mxu0 0
        %1030 = vmatpush1.bf16.msra.mxu0 0
        %1031 = vmatprep.subr.bf16.mxu0 0
        %1032 = vmatpush1.bf16.msra.mxu0 0
        %1033 = vmatprep.subr.bf16.mxu0 0
        %1034 = vmatpush1.bf16.msra.mxu0 0
        %1035 = vmatprep.mubr.bf16.mxu0 0
        %1036 = vmatmul.mubr.bf16.gmra.mrb[0].mxu0 %v659
        %v1037 = vpop.f32.mrb[0].mxu0
        %v1038 = vadd.f32 %v995, %v1037
        %v1039 = vpop.f32.mrb[0].mxu0
        %v1040 = vadd.f32 %v997, %v1039
        %v1041 = vpop.f32.mrb[0].mxu0
        %v1042 = vadd.f32 %v999, %v1041
        %v1043 = vpop.f32.mrb[0].mxu0
        %v1044 = vadd.f32 %v1001, %v1043
        %1045 = vdwg.mxu0
        %v1046 = vmax.f32 %v1038, 0.0
        %v1047 = vmax.f32 %v1040, 0.0
        %v1048 = vmax.f32 %v1042, 0.0
        %v1049 = vmax.f32 %v1044, 0.0
        %v1052 = vrot.slane %v1046, 1
        %v1053 = vrot.slane %v1047, 1
        %v1056 = vrot.slane %v1046, 2
        %v1057 = vrot.slane %v1047, 2
        %v1060 = vrot.slane %v1046, 3
        %v1061 = vrot.slane %v1047, 3
        %v1064 = vrot.slane %v1046, 4
        %v1065 = vrot.slane %v1047, 4
        %v1068 = vrot.slane %v1046, 5
        %v1069 = vrot.slane %v1047, 5
        %v1072 = vrot.slane %v1046, 6
        %v1073 = vrot.slane %v1047, 6
        %v1076 = vrot.slane %v1046, 7
        %v1077 = vrot.slane %v1047, 7
        %v1082 = vrot.slane %v1048, 1
        %v1083 = vrot.slane %v1049, 1
        %v1086 = vrot.slane %v1048, 2
        %v1087 = vrot.slane %v1049, 2
        %v1090 = vrot.slane %v1048, 3
        %v1091 = vrot.slane %v1049, 3
        %v1094 = vld [vmem:[#allocation7] sm:$0xff]
        %v1095 = vld [vmem:[#allocation7 + $0x8] sm:$0xff]
        %v1096 = vld [vmem:[#allocation7 + $0x10] sm:$0xff]
        %v1097 = vld [vmem:[#allocation7 + $0x18] sm:$0xff]
        %v1098 = vld [vmem:[#allocation7 + $0x20] sm:$0xff]
        %v1099 = vld [vmem:[#allocation7 + $0x28] sm:$0xff]
        %v1100 = vld [vmem:[#allocation7 + $0x30] sm:$0xff]
        %v1101 = vld [vmem:[#allocation7 + $0x38] sm:$0xff]
        %v1102 = vld [vmem:[#allocation7 + $0x40] sm:$0xff]
        %v1103 = vld [vmem:[#allocation7 + $0x48] sm:$0xff]
        %v1104 = vld [vmem:[#allocation7 + $0x50] sm:$0xff]
        %v1105 = vld [vmem:[#allocation7 + $0x58] sm:$0xff]
        %v1106 = vld [vmem:[#allocation7 + $0x60] sm:$0xff]
        %v1107 = vld [vmem:[#allocation7 + $0x68] sm:$0xff]
        %v1108 = vld [vmem:[#allocation7 + $0x70] sm:$0xff]
        %v1109 = vld [vmem:[#allocation7 + $0x78] sm:$0xff]
        %v1110 = vld [vmem:[#allocation7 + $0x80] sm:$0xff]
        %v1111 = vld [vmem:[#allocation7 + $0x88] sm:$0xff]
        %v1112 = vld [vmem:[#allocation7 + $0x90] sm:$0xff]
        %v1113 = vld [vmem:[#allocation7 + $0x98] sm:$0xff]
        %v1114 = vld [vmem:[#allocation7 + $0xa0] sm:$0xff]
        %v1115 = vld [vmem:[#allocation7 + $0xa8] sm:$0xff]
        %v1116 = vld [vmem:[#allocation7 + $0xb0] sm:$0xff]
        %v1117 = vld [vmem:[#allocation7 + $0xb8] sm:$0xff]
        %v1118 = vld [vmem:[#allocation7 + $0xc0] sm:$0xff]
        %v1119 = vld [vmem:[#allocation7 + $0xc8] sm:$0xff]
        %v1120 = vld [vmem:[#allocation7 + $0xd0] sm:$0xff]
        %v1121 = vld [vmem:[#allocation7 + $0xd8] sm:$0xff]
        %v1122 = vld [vmem:[#allocation7 + $0xe0] sm:$0xff]
        %v1123 = vld [vmem:[#allocation7 + $0xe8] sm:$0xff]
        %v1124 = vld [vmem:[#allocation7 + $0xf0] sm:$0xff]
        %v1125 = vld [vmem:[#allocation7 + $0xf8] sm:$0xff]
        %v1126 = vld [vmem:[#allocation7 + $0x100] sm:$0xff]
        %v1127 = vld [vmem:[#allocation7 + $0x108] sm:$0xff]
        %v1128 = vld [vmem:[#allocation7 + $0x110] sm:$0xff]
        %v1129 = vld [vmem:[#allocation7 + $0x118] sm:$0xff]
        %v1130 = vld [vmem:[#allocation7 + $0x120] sm:$0xff]
        %v1131 = vld [vmem:[#allocation7 + $0x128] sm:$0xff]
        %v1132 = vld [vmem:[#allocation7 + $0x130] sm:$0xff]
        %v1133 = vld [vmem:[#allocation7 + $0x138] sm:$0xff]
        %v1134 = vld [vmem:[#allocation7 + $0x140] sm:$0xff]
        %v1135 = vld [vmem:[#allocation7 + $0x148] sm:$0xff]
        %v1136 = vld [vmem:[#allocation7 + $0x150] sm:$0xff]
        %v1137 = vld [vmem:[#allocation7 + $0x158] sm:$0xff]
        %v1138 = vld [vmem:[#allocation7 + $0x160] sm:$0xff]
        %v1139 = vld [vmem:[#allocation7 + $0x168] sm:$0xff]
        %v1140 = vld [vmem:[#allocation7 + $0x170] sm:$0xff]
        %v1141 = vld [vmem:[#allocation7 + $0x178] sm:$0xff]
        %v1142 = vld [vmem:[#allocation7 + $0x180] sm:$0xff]
        %v1143 = vld [vmem:[#allocation7 + $0x188] sm:$0xff]
        %v1144 = vld [vmem:[#allocation7 + $0x190] sm:$0xff]
        %v1145 = vld [vmem:[#allocation7 + $0x198] sm:$0xff]
        %v1146 = vld [vmem:[#allocation7 + $0x1a0] sm:$0xff]
        %v1147 = vld [vmem:[#allocation7 + $0x1a8] sm:$0xff]
        %v1148 = vld [vmem:[#allocation7 + $0x1b0] sm:$0xff]
        %v1149 = vld [vmem:[#allocation7 + $0x1b8] sm:$0xff]
        %v1150 = vld [vmem:[#allocation7 + $0x1c0] sm:$0xff]
        %v1151 = vld [vmem:[#allocation7 + $0x1c8] sm:$0xff]
        %v1152 = vld [vmem:[#allocation7 + $0x1d0] sm:$0xff]
        %v1153 = vld [vmem:[#allocation7 + $0x1d8] sm:$0xff]
        %v1154 = vld [vmem:[#allocation7 + $0x1e0] sm:$0xff]
        %v1155 = vld [vmem:[#allocation7 + $0x1e8] sm:$0xff]
        %v1156 = vld [vmem:[#allocation7 + $0x1f0] sm:$0xff]
        %v1157 = vld [vmem:[#allocation7 + $0x1f8] sm:$0xff]
        %v1158 = vld [vmem:[#allocation7 + $0x200] sm:$0xff]
        %v1159 = vld [vmem:[#allocation7 + $0x208] sm:$0xff]
        %v1160 = vld [vmem:[#allocation7 + $0x210] sm:$0xff]
        %v1161 = vld [vmem:[#allocation7 + $0x218] sm:$0xff]
        %v1162 = vld [vmem:[#allocation7 + $0x220] sm:$0xff]
        %v1163 = vld [vmem:[#allocation7 + $0x228] sm:$0xff]
        %v1164 = vld [vmem:[#allocation7 + $0x230] sm:$0xff]
        %v1165 = vld [vmem:[#allocation7 + $0x238] sm:$0xff]
        %v1166 = vld [vmem:[#allocation7 + $0x240] sm:$0xff]
        %v1167 = vld [vmem:[#allocation7 + $0x248] sm:$0xff]
        %v1168 = vld [vmem:[#allocation7 + $0x250] sm:$0xff]
        %v1169 = vld [vmem:[#allocation7 + $0x258] sm:$0xff]
        %v1170 = vld [vmem:[#allocation7 + $0x260] sm:$0xff]
        %v1171 = vld [vmem:[#allocation7 + $0x268] sm:$0xff]
        %v1172 = vld [vmem:[#allocation7 + $0x270] sm:$0xff]
        %v1173 = vld [vmem:[#allocation7 + $0x278] sm:$0xff]
        %v1174 = vld [vmem:[#allocation7 + $0x280] sm:$0xff]
        %v1175 = vld [vmem:[#allocation7 + $0x288] sm:$0xff]
        %v1176 = vld [vmem:[#allocation7 + $0x290] sm:$0xff]
        %v1177 = vld [vmem:[#allocation7 + $0x298] sm:$0xff]
        %v1178 = vld [vmem:[#allocation7 + $0x2a0] sm:$0xff]
        %v1179 = vld [vmem:[#allocation7 + $0x2a8] sm:$0xff]
        %v1180 = vld [vmem:[#allocation7 + $0x2b0] sm:$0xff]
        %v1181 = vld [vmem:[#allocation7 + $0x2b8] sm:$0xff]
        %v1182 = vld [vmem:[#allocation7 + $0x2c0] sm:$0xff]
        %v1183 = vld [vmem:[#allocation7 + $0x2c8] sm:$0xff]
        %v1184 = vld [vmem:[#allocation7 + $0x2d0] sm:$0xff]
        %v1185 = vld [vmem:[#allocation7 + $0x2d8] sm:$0xff]
        %v1186 = vld [vmem:[#allocation7 + $0x2e0] sm:$0xff]
        %v1187 = vld [vmem:[#allocation7 + $0x2e8] sm:$0xff]
        %v1188 = vld [vmem:[#allocation7 + $0x2f0] sm:$0xff]
        %v1189 = vld [vmem:[#allocation7 + $0x2f8] sm:$0xff]
        %v1190 = vld [vmem:[#allocation7 + $0x300] sm:$0xff]
        %v1191 = vld [vmem:[#allocation7 + $0x308] sm:$0xff]
        %v1192 = vld [vmem:[#allocation7 + $0x310] sm:$0xff]
        %v1193 = vld [vmem:[#allocation7 + $0x318] sm:$0xff]
        %v1194 = vld [vmem:[#allocation7 + $0x320] sm:$0xff]
        %v1195 = vld [vmem:[#allocation7 + $0x328] sm:$0xff]
        %v1196 = vld [vmem:[#allocation7 + $0x330] sm:$0xff]
        %v1197 = vld [vmem:[#allocation7 + $0x338] sm:$0xff]
        %v1198 = vld [vmem:[#allocation7 + $0x340] sm:$0xff]
        %v1199 = vld [vmem:[#allocation7 + $0x348] sm:$0xff]
        %v1200 = vld [vmem:[#allocation7 + $0x350] sm:$0xff]
        %v1201 = vld [vmem:[#allocation7 + $0x358] sm:$0xff]
        %v1202 = vld [vmem:[#allocation7 + $0x360] sm:$0xff]
        %v1203 = vld [vmem:[#allocation7 + $0x368] sm:$0xff]
        %v1204 = vld [vmem:[#allocation7 + $0x370] sm:$0xff]
        %v1205 = vld [vmem:[#allocation7 + $0x378] sm:$0xff]
        %v1206 = vld [vmem:[#allocation7 + $0x380] sm:$0xff]
        %v1207 = vld [vmem:[#allocation7 + $0x388] sm:$0xff]
        %v1208 = vld [vmem:[#allocation7 + $0x390] sm:$0xff]
        %v1209 = vld [vmem:[#allocation7 + $0x398] sm:$0xff]
        %v1210 = vld [vmem:[#allocation7 + $0x3a0] sm:$0xff]
        %v1211 = vld [vmem:[#allocation7 + $0x3a8] sm:$0xff]
        %v1212 = vld [vmem:[#allocation7 + $0x3b0] sm:$0xff]
        %v1213 = vld [vmem:[#allocation7 + $0x3b8] sm:$0xff]
        %v1214 = vld [vmem:[#allocation7 + $0x3c0] sm:$0xff]
        %v1215 = vld [vmem:[#allocation7 + $0x3c8] sm:$0xff]
        %v1216 = vld [vmem:[#allocation7 + $0x3d0] sm:$0xff]
        %v1217 = vld [vmem:[#allocation7 + $0x3d8] sm:$0xff]
        %v1218 = vld [vmem:[#allocation7 + $0x3e0] sm:$0xff]
        %v1219 = vld [vmem:[#allocation7 + $0x3e8] sm:$0xff]
        %v1220 = vld [vmem:[#allocation7 + $0x3f0] sm:$0xff]
        %v1221 = vld [vmem:[#allocation7 + $0x3f8] sm:$0xff]
        %v1222 = vld [vmem:[#allocation7 + $0x400] sm:$0xff]
        %v1223 = vld [vmem:[#allocation7 + $0x408] sm:$0xff]
        %v1224 = vld [vmem:[#allocation7 + $0x410] sm:$0xff]
        %v1225 = vld [vmem:[#allocation7 + $0x418] sm:$0xff]
        %v1226 = vld [vmem:[#allocation7 + $0x420] sm:$0xff]
        %v1227 = vld [vmem:[#allocation7 + $0x428] sm:$0xff]
        %v1228 = vld [vmem:[#allocation7 + $0x430] sm:$0xff]
        %v1229 = vld [vmem:[#allocation7 + $0x438] sm:$0xff]
        %v1230 = vld [vmem:[#allocation7 + $0x440] sm:$0xff]
        %v1231 = vld [vmem:[#allocation7 + $0x448] sm:$0xff]
        %v1232 = vld [vmem:[#allocation7 + $0x450] sm:$0xff]
        %v1233 = vld [vmem:[#allocation7 + $0x458] sm:$0xff]
        %v1234 = vld [vmem:[#allocation7 + $0x460] sm:$0xff]
        %v1235 = vld [vmem:[#allocation7 + $0x468] sm:$0xff]
        %v1236 = vld [vmem:[#allocation7 + $0x470] sm:$0xff]
        %v1237 = vld [vmem:[#allocation7 + $0x478] sm:$0xff]
        %v1238 = vld [vmem:[#allocation7 + $0x480] sm:$0xff]
        %v1239 = vld [vmem:[#allocation7 + $0x488] sm:$0xff]
        %v1240 = vld [vmem:[#allocation7 + $0x490] sm:$0xff]
        %v1241 = vld [vmem:[#allocation7 + $0x498] sm:$0xff]
        %v1242 = vld [vmem:[#allocation7 + $0x4a0] sm:$0xff]
        %v1243 = vld [vmem:[#allocation7 + $0x4a8] sm:$0xff]
        %v1244 = vld [vmem:[#allocation7 + $0x4b0] sm:$0xff]
        %v1245 = vld [vmem:[#allocation7 + $0x4b8] sm:$0xff]
        %v1246 = vld [vmem:[#allocation7 + $0x4c0] sm:$0xff]
        %v1247 = vld [vmem:[#allocation7 + $0x4c8] sm:$0xff]
        %v1248 = vld [vmem:[#allocation7 + $0x4d0] sm:$0xff]
        %v1249 = vld [vmem:[#allocation7 + $0x4d8] sm:$0xff]
        %v1250 = vld [vmem:[#allocation7 + $0x4e0] sm:$0xff]
        %v1251 = vld [vmem:[#allocation7 + $0x4e8] sm:$0xff]
        %v1252 = vld [vmem:[#allocation7 + $0x4f0] sm:$0xff]
        %v1253 = vld [vmem:[#allocation7 + $0x4f8] sm:$0xff]
        %v1254 = vld [vmem:[#allocation7 + $0x500] sm:$0xff]
        %v1255 = vld [vmem:[#allocation7 + $0x508] sm:$0xff]
        %v1256 = vld [vmem:[#allocation7 + $0x510] sm:$0xff]
        %v1257 = vld [vmem:[#allocation7 + $0x518] sm:$0xff]
        %v1258 = vld [vmem:[#allocation7 + $0x520] sm:$0xff]
        %v1259 = vld [vmem:[#allocation7 + $0x528] sm:$0xff]
        %v1260 = vld [vmem:[#allocation7 + $0x530] sm:$0xff]
        %v1261 = vld [vmem:[#allocation7 + $0x538] sm:$0xff]
        %v1262 = vld [vmem:[#allocation7 + $0x540] sm:$0xff]
        %v1263 = vld [vmem:[#allocation7 + $0x548] sm:$0xff]
        %v1264 = vld [vmem:[#allocation7 + $0x550] sm:$0xff]
        %v1265 = vld [vmem:[#allocation7 + $0x558] sm:$0xff]
        %v1266 = vld [vmem:[#allocation7 + $0x560] sm:$0xff]
        %v1267 = vld [vmem:[#allocation7 + $0x568] sm:$0xff]
        %v1268 = vld [vmem:[#allocation7 + $0x570] sm:$0xff]
        %v1269 = vld [vmem:[#allocation7 + $0x578] sm:$0xff]
        %v1270 = vld [vmem:[#allocation7 + $0x580] sm:$0xff]
        %v1271 = vld [vmem:[#allocation7 + $0x588] sm:$0xff]
        %v1272 = vld [vmem:[#allocation7 + $0x590] sm:$0xff]
        %v1273 = vld [vmem:[#allocation7 + $0x598] sm:$0xff]
        %v1274 = vld [vmem:[#allocation7 + $0x5a0] sm:$0xff]
        %v1275 = vld [vmem:[#allocation7 + $0x5a8] sm:$0xff]
        %v1276 = vld [vmem:[#allocation7 + $0x5b0] sm:$0xff]
        %v1277 = vld [vmem:[#allocation7 + $0x5b8] sm:$0xff]
        %v1278 = vld [vmem:[#allocation7 + $0x5c0] sm:$0xff]
        %v1279 = vld [vmem:[#allocation7 + $0x5c8] sm:$0xff]
        %v1280 = vld [vmem:[#allocation7 + $0x5d0] sm:$0xff]
        %v1281 = vld [vmem:[#allocation7 + $0x5d8] sm:$0xff]
        %v1282 = vld [vmem:[#allocation7 + $0x5e0] sm:$0xff]
        %v1283 = vld [vmem:[#allocation7 + $0x5e8] sm:$0xff]
        %v1284 = vld [vmem:[#allocation7 + $0x5f0] sm:$0xff]
        %v1285 = vld [vmem:[#allocation7 + $0x5f8] sm:$0xff]
        %v1286 = vld [vmem:[#allocation7 + $0x600] sm:$0xff]
        %v1287 = vld [vmem:[#allocation7 + $0x608] sm:$0xff]
        %v1288 = vld [vmem:[#allocation7 + $0x610] sm:$0xff]
        %v1289 = vld [vmem:[#allocation7 + $0x618] sm:$0xff]
        %v1290 = vld [vmem:[#allocation7 + $0x620] sm:$0xff]
        %v1291 = vld [vmem:[#allocation7 + $0x628] sm:$0xff]
        %v1292 = vld [vmem:[#allocation7 + $0x630] sm:$0xff]
        %v1293 = vld [vmem:[#allocation7 + $0x638] sm:$0xff]
        %v1294 = vld [vmem:[#allocation7 + $0x640] sm:$0xff]
        %v1295 = vld [vmem:[#allocation7 + $0x648] sm:$0xff]
        %v1296 = vld [vmem:[#allocation7 + $0x650] sm:$0xff]
        %v1297 = vld [vmem:[#allocation7 + $0x658] sm:$0xff]
        %v1298 = vld [vmem:[#allocation7 + $0x660] sm:$0xff]
        %v1299 = vld [vmem:[#allocation7 + $0x668] sm:$0xff]
        %v1300 = vld [vmem:[#allocation7 + $0x670] sm:$0xff]
        %v1301 = vld [vmem:[#allocation7 + $0x678] sm:$0xff]
        %v1302 = vld [vmem:[#allocation7 + $0x680] sm:$0xff]
        %v1303 = vld [vmem:[#allocation7 + $0x688] sm:$0xff]
        %v1304 = vld [vmem:[#allocation7 + $0x690] sm:$0xff]
        %v1305 = vld [vmem:[#allocation7 + $0x698] sm:$0xff]
        %v1306 = vld [vmem:[#allocation7 + $0x6a0] sm:$0xff]
        %v1307 = vld [vmem:[#allocation7 + $0x6a8] sm:$0xff]
        %v1308 = vld [vmem:[#allocation7 + $0x6b0] sm:$0xff]
        %v1309 = vld [vmem:[#allocation7 + $0x6b8] sm:$0xff]
        %v1310 = vld [vmem:[#allocation7 + $0x6c0] sm:$0xff]
        %v1311 = vld [vmem:[#allocation7 + $0x6c8] sm:$0xff]
        %v1312 = vld [vmem:[#allocation7 + $0x6d0] sm:$0xff]
        %v1313 = vld [vmem:[#allocation7 + $0x6d8] sm:$0xff]
        %v1314 = vld [vmem:[#allocation7 + $0x6e0] sm:$0xff]
        %v1315 = vld [vmem:[#allocation7 + $0x6e8] sm:$0xff]
        %v1316 = vld [vmem:[#allocation7 + $0x6f0] sm:$0xff]
        %v1317 = vld [vmem:[#allocation7 + $0x6f8] sm:$0xff]
        %v1318 = vld [vmem:[#allocation7 + $0x700] sm:$0xff]
        %v1319 = vld [vmem:[#allocation7 + $0x708] sm:$0xff]
        %v1320 = vld [vmem:[#allocation7 + $0x710] sm:$0xff]
        %v1321 = vld [vmem:[#allocation7 + $0x718] sm:$0xff]
        %v1322 = vld [vmem:[#allocation7 + $0x720] sm:$0xff]
        %v1323 = vld [vmem:[#allocation7 + $0x728] sm:$0xff]
        %v1324 = vld [vmem:[#allocation7 + $0x730] sm:$0xff]
        %v1325 = vld [vmem:[#allocation7 + $0x738] sm:$0xff]
        %v1326 = vld [vmem:[#allocation7 + $0x740] sm:$0xff]
        %v1327 = vld [vmem:[#allocation7 + $0x748] sm:$0xff]
        %v1328 = vld [vmem:[#allocation7 + $0x750] sm:$0xff]
        %v1329 = vld [vmem:[#allocation7 + $0x758] sm:$0xff]
        %v1330 = vld [vmem:[#allocation7 + $0x760] sm:$0xff]
        %v1331 = vld [vmem:[#allocation7 + $0x768] sm:$0xff]
        %v1332 = vld [vmem:[#allocation7 + $0x770] sm:$0xff]
        %v1333 = vld [vmem:[#allocation7 + $0x778] sm:$0xff]
        %v1334 = vld [vmem:[#allocation7 + $0x780] sm:$0xff]
        %v1335 = vld [vmem:[#allocation7 + $0x788] sm:$0xff]
        %v1336 = vld [vmem:[#allocation7 + $0x790] sm:$0xff]
        %v1337 = vld [vmem:[#allocation7 + $0x798] sm:$0xff]
        %v1338 = vld [vmem:[#allocation7 + $0x7a0] sm:$0xff]
        %v1339 = vld [vmem:[#allocation7 + $0x7a8] sm:$0xff]
        %v1340 = vld [vmem:[#allocation7 + $0x7b0] sm:$0xff]
        %v1341 = vld [vmem:[#allocation7 + $0x7b8] sm:$0xff]
        %v1342 = vld [vmem:[#allocation7 + $0x7c0] sm:$0xff]
        %v1343 = vld [vmem:[#allocation7 + $0x7c8] sm:$0xff]
        %v1344 = vld [vmem:[#allocation7 + $0x7d0] sm:$0xff]
        %v1345 = vld [vmem:[#allocation7 + $0x7d8] sm:$0xff]
        %v1346 = vld [vmem:[#allocation7 + $0x7e0] sm:$0xff]
        %v1347 = vld [vmem:[#allocation7 + $0x7e8] sm:$0xff]
        %v1348 = vld [vmem:[#allocation7 + $0x7f0] sm:$0xff]
        %v1349 = vld [vmem:[#allocation7 + $0x7f8] sm:$0xff]
        %v1350 = vld [vmem:[#allocation7 + $0x800] sm:$0xff]
        %v1351 = vld [vmem:[#allocation7 + $0x808] sm:$0xff]
        %v1352 = vld [vmem:[#allocation7 + $0x810] sm:$0xff]
        %v1353 = vld [vmem:[#allocation7 + $0x818] sm:$0xff]
        %v1354 = vld [vmem:[#allocation7 + $0x820] sm:$0xff]
        %v1355 = vld [vmem:[#allocation7 + $0x828] sm:$0xff]
        %v1356 = vld [vmem:[#allocation7 + $0x830] sm:$0xff]
        %v1357 = vld [vmem:[#allocation7 + $0x838] sm:$0xff]
        %v1358 = vld [vmem:[#allocation7 + $0x840] sm:$0xff]
        %v1359 = vld [vmem:[#allocation7 + $0x848] sm:$0xff]
        %v1360 = vld [vmem:[#allocation7 + $0x850] sm:$0xff]
        %v1361 = vld [vmem:[#allocation7 + $0x858] sm:$0xff]
        %v1362 = vld [vmem:[#allocation7 + $0x860] sm:$0xff]
        %v1363 = vld [vmem:[#allocation7 + $0x868] sm:$0xff]
        %v1364 = vld [vmem:[#allocation7 + $0x870] sm:$0xff]
        %v1365 = vld [vmem:[#allocation7 + $0x878] sm:$0xff]
        %v1366 = vld [vmem:[#allocation7 + $0x880] sm:$0xff]
        %v1367 = vld [vmem:[#allocation7 + $0x888] sm:$0xff]
        %v1368 = vld [vmem:[#allocation7 + $0x890] sm:$0xff]
        %v1369 = vld [vmem:[#allocation7 + $0x898] sm:$0xff]
        %v1370 = vld [vmem:[#allocation7 + $0x8a0] sm:$0xff]
        %v1371 = vld [vmem:[#allocation7 + $0x8a8] sm:$0xff]
        %v1372 = vld [vmem:[#allocation7 + $0x8b0] sm:$0xff]
        %v1373 = vld [vmem:[#allocation7 + $0x8b8] sm:$0xff]
        %v1374 = vld [vmem:[#allocation7 + $0x8c0] sm:$0xff]
        %v1375 = vld [vmem:[#allocation7 + $0x8c8] sm:$0xff]
        %v1376 = vld [vmem:[#allocation7 + $0x8d0] sm:$0xff]
        %v1377 = vld [vmem:[#allocation7 + $0x8d8] sm:$0xff]
        %v1378 = vld [vmem:[#allocation7 + $0x8e0] sm:$0xff]
        %v1379 = vld [vmem:[#allocation7 + $0x8e8] sm:$0xff]
        %v1380 = vld [vmem:[#allocation7 + $0x8f0] sm:$0xff]
        %v1381 = vld [vmem:[#allocation7 + $0x8f8] sm:$0xff]
        %v1382 = vld [vmem:[#allocation7 + $0x900] sm:$0xff]
        %v1383 = vld [vmem:[#allocation7 + $0x908] sm:$0xff]
        %v1384 = vld [vmem:[#allocation7 + $0x910] sm:$0xff]
        %v1385 = vld [vmem:[#allocation7 + $0x918] sm:$0xff]
        %v1386 = vld [vmem:[#allocation7 + $0x920] sm:$0xff]
        %v1387 = vld [vmem:[#allocation7 + $0x928] sm:$0xff]
        %v1388 = vld [vmem:[#allocation7 + $0x930] sm:$0xff]
        %v1389 = vld [vmem:[#allocation7 + $0x938] sm:$0xff]
        %v1390 = vld [vmem:[#allocation7 + $0x940] sm:$0xff]
        %v1391 = vld [vmem:[#allocation7 + $0x948] sm:$0xff]
        %v1392 = vld [vmem:[#allocation7 + $0x950] sm:$0xff]
        %v1393 = vld [vmem:[#allocation7 + $0x958] sm:$0xff]
        %v1394 = vld [vmem:[#allocation7 + $0x960] sm:$0xff]
        %v1395 = vld [vmem:[#allocation7 + $0x968] sm:$0xff]
        %v1396 = vld [vmem:[#allocation7 + $0x970] sm:$0xff]
        %v1397 = vld [vmem:[#allocation7 + $0x978] sm:$0xff]
        %v1398 = vld [vmem:[#allocation7 + $0x980] sm:$0xff]
        %v1399 = vld [vmem:[#allocation7 + $0x988] sm:$0xff]
        %v1400 = vld [vmem:[#allocation7 + $0x990] sm:$0xff]
        %v1401 = vld [vmem:[#allocation7 + $0x998] sm:$0xff]
        %v1402 = vld [vmem:[#allocation7 + $0x9a0] sm:$0xff]
        %v1403 = vld [vmem:[#allocation7 + $0x9a8] sm:$0xff]
        %v1404 = vld [vmem:[#allocation7 + $0x9b0] sm:$0xff]
        %v1405 = vld [vmem:[#allocation7 + $0x9b8] sm:$0xff]
        %v1406 = vld [vmem:[#allocation7 + $0x9c0] sm:$0xff]
        %v1407 = vld [vmem:[#allocation7 + $0x9c8] sm:$0xff]
        %v1408 = vld [vmem:[#allocation7 + $0x9d0] sm:$0xff]
        %v1409 = vld [vmem:[#allocation7 + $0x9d8] sm:$0xff]
        %v1410 = vld [vmem:[#allocation7 + $0x9e0] sm:$0xff]
        %v1411 = vld [vmem:[#allocation7 + $0x9e8] sm:$0xff]
        %v1412 = vld [vmem:[#allocation7 + $0x9f0] sm:$0xff]
        %v1413 = vld [vmem:[#allocation7 + $0x9f8] sm:$0xff]
        %v1414 = vld [vmem:[#allocation7 + $0xa00] sm:$0xff]
        %v1415 = vld [vmem:[#allocation7 + $0xa08] sm:$0xff]
        %v1416 = vld [vmem:[#allocation7 + $0xa10] sm:$0xff]
        %v1417 = vld [vmem:[#allocation7 + $0xa18] sm:$0xff]
        %v1418 = vld [vmem:[#allocation7 + $0xa20] sm:$0xff]
        %v1419 = vld [vmem:[#allocation7 + $0xa28] sm:$0xff]
        %v1420 = vld [vmem:[#allocation7 + $0xa30] sm:$0xff]
        %v1421 = vld [vmem:[#allocation7 + $0xa38] sm:$0xff]
        %v1422 = vld [vmem:[#allocation7 + $0xa40] sm:$0xff]
        %v1423 = vld [vmem:[#allocation7 + $0xa48] sm:$0xff]
        %v1424 = vld [vmem:[#allocation7 + $0xa50] sm:$0xff]
        %v1425 = vld [vmem:[#allocation7 + $0xa58] sm:$0xff]
        %v1426 = vld [vmem:[#allocation7 + $0xa60] sm:$0xff]
        %v1427 = vld [vmem:[#allocation7 + $0xa68] sm:$0xff]
        %v1428 = vld [vmem:[#allocation7 + $0xa70] sm:$0xff]
        %v1429 = vld [vmem:[#allocation7 + $0xa78] sm:$0xff]
        %v1430 = vld [vmem:[#allocation7 + $0xa80] sm:$0xff]
        %v1431 = vld [vmem:[#allocation7 + $0xa88] sm:$0xff]
        %v1432 = vld [vmem:[#allocation7 + $0xa90] sm:$0xff]
        %v1433 = vld [vmem:[#allocation7 + $0xa98] sm:$0xff]
        %v1434 = vld [vmem:[#allocation7 + $0xaa0] sm:$0xff]
        %v1435 = vld [vmem:[#allocation7 + $0xaa8] sm:$0xff]
        %v1436 = vld [vmem:[#allocation7 + $0xab0] sm:$0xff]
        %v1437 = vld [vmem:[#allocation7 + $0xab8] sm:$0xff]
        %v1438 = vld [vmem:[#allocation7 + $0xac0] sm:$0xff]
        %v1439 = vld [vmem:[#allocation7 + $0xac8] sm:$0xff]
        %v1440 = vld [vmem:[#allocation7 + $0xad0] sm:$0xff]
        %v1441 = vld [vmem:[#allocation7 + $0xad8] sm:$0xff]
        %v1442 = vld [vmem:[#allocation7 + $0xae0] sm:$0xff]
        %v1443 = vld [vmem:[#allocation7 + $0xae8] sm:$0xff]
        %v1444 = vld [vmem:[#allocation7 + $0xaf0] sm:$0xff]
        %v1445 = vld [vmem:[#allocation7 + $0xaf8] sm:$0xff]
        %v1446 = vld [vmem:[#allocation7 + $0xb00] sm:$0xff]
        %v1447 = vld [vmem:[#allocation7 + $0xb08] sm:$0xff]
        %v1448 = vld [vmem:[#allocation7 + $0xb10] sm:$0xff]
        %v1449 = vld [vmem:[#allocation7 + $0xb18] sm:$0xff]
        %v1450 = vld [vmem:[#allocation7 + $0xb20] sm:$0xff]
        %v1451 = vld [vmem:[#allocation7 + $0xb28] sm:$0xff]
        %v1452 = vld [vmem:[#allocation7 + $0xb30] sm:$0xff]
        %v1453 = vld [vmem:[#allocation7 + $0xb38] sm:$0xff]
        %v1454 = vld [vmem:[#allocation7 + $0xb40] sm:$0xff]
        %v1455 = vld [vmem:[#allocation7 + $0xb48] sm:$0xff]
        %v1456 = vld [vmem:[#allocation7 + $0xb50] sm:$0xff]
        %v1457 = vld [vmem:[#allocation7 + $0xb58] sm:$0xff]
        %v1458 = vld [vmem:[#allocation7 + $0xb60] sm:$0xff]
        %v1459 = vld [vmem:[#allocation7 + $0xb68] sm:$0xff]
        %v1460 = vld [vmem:[#allocation7 + $0xb70] sm:$0xff]
        %v1461 = vld [vmem:[#allocation7 + $0xb78] sm:$0xff]
        %v1462 = vld [vmem:[#allocation7 + $0xb80] sm:$0xff]
        %v1463 = vld [vmem:[#allocation7 + $0xb88] sm:$0xff]
        %v1464 = vld [vmem:[#allocation7 + $0xb90] sm:$0xff]
        %v1465 = vld [vmem:[#allocation7 + $0xb98] sm:$0xff]
        %v1466 = vld [vmem:[#allocation7 + $0xba0] sm:$0xff]
        %v1467 = vld [vmem:[#allocation7 + $0xba8] sm:$0xff]
        %v1468 = vld [vmem:[#allocation7 + $0xbb0] sm:$0xff]
        %v1469 = vld [vmem:[#allocation7 + $0xbb8] sm:$0xff]
        %v1470 = vld [vmem:[#allocation7 + $0xbc0] sm:$0xff]
        %v1471 = vld [vmem:[#allocation7 + $0xbc8] sm:$0xff]
        %v1472 = vld [vmem:[#allocation7 + $0xbd0] sm:$0xff]
        %v1473 = vld [vmem:[#allocation7 + $0xbd8] sm:$0xff]
        %v1474 = vld [vmem:[#allocation7 + $0xbe0] sm:$0xff]
        %v1475 = vld [vmem:[#allocation7 + $0xbe8] sm:$0xff]
        %v1476 = vld [vmem:[#allocation7 + $0xbf0] sm:$0xff]
        %v1477 = vld [vmem:[#allocation7 + $0xbf8] sm:$0xff]
        %v1478 = vld [vmem:[#allocation9] sm:$0x1]
        %1479 = vmatprep.subr.mxu0 0.0
        %1480 = vmatpush1.msra.mxu0 %v1094
        %1481 = vmatprep.subr.mxu0 0.0
        %1482 = vmatpush1.msra.mxu0 %v1095
        %1483 = vmatprep.subr.mxu0 0.0
        %1484 = vmatpush1.msra.mxu0 %v1096
        %1485 = vmatprep.subr.mxu0 0.0
        %1486 = vmatpush1.msra.mxu0 %v1097
        %1487 = vmatprep.subr.mxu0 0.0
        %1488 = vmatpush1.msra.mxu0 %v1098
        %1489 = vmatprep.subr.mxu0 0.0
        %1490 = vmatpush1.msra.mxu0 %v1099
        %1491 = vmatprep.subr.mxu0 0.0
        %1492 = vmatpush1.msra.mxu0 %v1100
        %1493 = vmatprep.subr.mxu0 0.0
        %1494 = vmatpush1.msra.mxu0 %v1101
        %1495 = vmatprep.subr.mxu0 0.0
        %1496 = vmatpush1.msra.mxu0 %v1102
        %1497 = vmatprep.subr.mxu0 0.0
        %1498 = vmatpush1.msra.mxu0 %v1103
        %1499 = vmatprep.subr.mxu0 0.0
        %1500 = vmatpush1.msra.mxu0 %v1104
        %1501 = vmatprep.subr.mxu0 0.0
        %1502 = vmatpush1.msra.mxu0 %v1105
        %1503 = vmatprep.subr.mxu0 0.0
        %1504 = vmatpush1.msra.mxu0 %v1106
        %1505 = vmatprep.subr.mxu0 0.0
        %1506 = vmatpush1.msra.mxu0 %v1107
        %1507 = vmatprep.subr.mxu0 0.0
        %1508 = vmatpush1.msra.mxu0 %v1108
        %1509 = vmatprep.subr.mxu0 0.0
        %1510 = vmatpush1.msra.mxu0 %v1109
        %1511 = vmatprep.subr.mxu0 0.0
        %1512 = vmatpush1.msra.mxu0 %v1110
        %1513 = vmatprep.subr.mxu0 0.0
        %1514 = vmatpush1.msra.mxu0 %v1111
        %1515 = vmatprep.subr.mxu0 0.0
        %1516 = vmatpush1.msra.mxu0 %v1112
        %1517 = vmatprep.subr.mxu0 0.0
        %1518 = vmatpush1.msra.mxu0 %v1113
        %1519 = vmatprep.subr.mxu0 0.0
        %1520 = vmatpush1.msra.mxu0 %v1114
        %1521 = vmatprep.subr.mxu0 0.0
        %1522 = vmatpush1.msra.mxu0 %v1115
        %1523 = vmatprep.subr.mxu0 0.0
        %1524 = vmatpush1.msra.mxu0 %v1116
        %1525 = vmatprep.subr.mxu0 0.0
        %1526 = vmatpush1.msra.mxu0 %v1117
        %1527 = vmatprep.subr.mxu0 0.0
        %1528 = vmatpush1.msra.mxu0 %v1118
        %1529 = vmatprep.subr.mxu0 0.0
        %1530 = vmatpush1.msra.mxu0 %v1119
        %1531 = vmatprep.subr.mxu0 0.0
        %1532 = vmatpush1.msra.mxu0 %v1120
        %1533 = vmatprep.subr.mxu0 0.0
        %1534 = vmatpush1.msra.mxu0 %v1121
        %1535 = vmatprep.subr.mxu0 0.0
        %1536 = vmatpush1.msra.mxu0 %v1122
        %1537 = vmatprep.subr.mxu0 0.0
        %1538 = vmatpush1.msra.mxu0 %v1123
        %1539 = vmatprep.subr.mxu0 0.0
        %1540 = vmatpush1.msra.mxu0 %v1124
        %1541 = vmatprep.subr.mxu0 0.0
        %1542 = vmatpush1.msra.mxu0 %v1125
        %1543 = vmatprep.mubr.f32.mxu0 %v1047
        %1544 = vmatmul.mubr.f32.gmra.mrb[0].mxu0 %v1046
        %v1545 = vpop.f32.mrb[0].mxu0
        %v1546 = vadd.f32 %v1478, %v1545
        %v1547 = vpop.f32.mrb[0].mxu0
        %1548 = vdwg.mxu0
        %1549 = vmatprep.subr.mxu0 0.0
        %1550 = vmatpush1.msra.mxu0 %v1126
        %1551 = vmatprep.subr.mxu0 0.0
        %1552 = vmatpush1.msra.mxu0 %v1127
        %1553 = vmatprep.subr.mxu0 0.0
        %1554 = vmatpush1.msra.mxu0 %v1128
        %1555 = vmatprep.subr.mxu0 0.0
        %1556 = vmatpush1.msra.mxu0 %v1129
        %1557 = vmatprep.subr.mxu0 0.0
        %1558 = vmatpush1.msra.mxu0 %v1130
        %1559 = vmatprep.subr.mxu0 0.0
        %1560 = vmatpush1.msra.mxu0 %v1131
        %1561 = vmatprep.subr.mxu0 0.0
        %1562 = vmatpush1.msra.mxu0 %v1132
        %1563 = vmatprep.subr.mxu0 0.0
        %1564 = vmatpush1.msra.mxu0 %v1133
        %1565 = vmatprep.subr.mxu0 0.0
        %1566 = vmatpush1.msra.mxu0 %v1134
        %1567 = vmatprep.subr.mxu0 0.0
        %1568 = vmatpush1.msra.mxu0 %v1135
        %1569 = vmatprep.subr.mxu0 0.0
        %1570 = vmatpush1.msra.mxu0 %v1136
        %1571 = vmatprep.subr.mxu0 0.0
        %1572 = vmatpush1.msra.mxu0 %v1137
        %1573 = vmatprep.subr.mxu0 0.0
        %1574 = vmatpush1.msra.mxu0 %v1138
        %1575 = vmatprep.subr.mxu0 0.0
        %1576 = vmatpush1.msra.mxu0 %v1139
        %1577 = vmatprep.subr.mxu0 0.0
        %1578 = vmatpush1.msra.mxu0 %v1140
        %1579 = vmatprep.subr.mxu0 0.0
        %1580 = vmatpush1.msra.mxu0 %v1141
        %1581 = vmatprep.subr.mxu0 0.0
        %1582 = vmatpush1.msra.mxu0 %v1142
        %1583 = vmatprep.subr.mxu0 0.0
        %1584 = vmatpush1.msra.mxu0 %v1143
        %1585 = vmatprep.subr.mxu0 0.0
        %1586 = vmatpush1.msra.mxu0 %v1144
        %1587 = vmatprep.subr.mxu0 0.0
        %1588 = vmatpush1.msra.mxu0 %v1145
        %1589 = vmatprep.subr.mxu0 0.0
        %1590 = vmatpush1.msra.mxu0 %v1146
        %1591 = vmatprep.subr.mxu0 0.0
        %1592 = vmatpush1.msra.mxu0 %v1147
        %1593 = vmatprep.subr.mxu0 0.0
        %1594 = vmatpush1.msra.mxu0 %v1148
        %1595 = vmatprep.subr.mxu0 0.0
        %1596 = vmatpush1.msra.mxu0 %v1149
        %1597 = vmatprep.subr.mxu0 0.0
        %1598 = vmatpush1.msra.mxu0 %v1150
        %1599 = vmatprep.subr.mxu0 0.0
        %1600 = vmatpush1.msra.mxu0 %v1151
        %1601 = vmatprep.subr.mxu0 0.0
        %1602 = vmatpush1.msra.mxu0 %v1152
        %1603 = vmatprep.subr.mxu0 0.0
        %1604 = vmatpush1.msra.mxu0 %v1153
        %1605 = vmatprep.subr.mxu0 0.0
        %1606 = vmatpush1.msra.mxu0 %v1154
        %1607 = vmatprep.subr.mxu0 0.0
        %1608 = vmatpush1.msra.mxu0 %v1155
        %1609 = vmatprep.subr.mxu0 0.0
        %1610 = vmatpush1.msra.mxu0 %v1156
        %1611 = vmatprep.subr.mxu0 0.0
        %1612 = vmatpush1.msra.mxu0 %v1157
        %1613 = vmatprep.mubr.f32.mxu0 %v1053
        %1614 = vmatmul.mubr.f32.gmra.mrb[0].mxu0 %v1052
        %v1615 = vpop.f32.mrb[0].mxu0
        %v1616 = vadd.f32 %v1546, %v1615
        %v1617 = vpop.f32.mrb[0].mxu0
        %1618 = vdwg.mxu0
        %1619 = vmatprep.subr.mxu0 0.0
        %1620 = vmatpush1.msra.mxu0 %v1158
        %1621 = vmatprep.subr.mxu0 0.0
        %1622 = vmatpush1.msra.mxu0 %v1159
        %1623 = vmatprep.subr.mxu0 0.0
        %1624 = vmatpush1.msra.mxu0 %v1160
        %1625 = vmatprep.subr.mxu0 0.0
        %1626 = vmatpush1.msra.mxu0 %v1161
        %1627 = vmatprep.subr.mxu0 0.0
        %1628 = vmatpush1.msra.mxu0 %v1162
        %1629 = vmatprep.subr.mxu0 0.0
        %1630 = vmatpush1.msra.mxu0 %v1163
        %1631 = vmatprep.subr.mxu0 0.0
        %1632 = vmatpush1.msra.mxu0 %v1164
        %1633 = vmatprep.subr.mxu0 0.0
        %1634 = vmatpush1.msra.mxu0 %v1165
        %1635 = vmatprep.subr.mxu0 0.0
        %1636 = vmatpush1.msra.mxu0 %v1166
        %1637 = vmatprep.subr.mxu0 0.0
        %1638 = vmatpush1.msra.mxu0 %v1167
        %1639 = vmatprep.subr.mxu0 0.0
        %1640 = vmatpush1.msra.mxu0 %v1168
        %1641 = vmatprep.subr.mxu0 0.0
        %1642 = vmatpush1.msra.mxu0 %v1169
        %1643 = vmatprep.subr.mxu0 0.0
        %1644 = vmatpush1.msra.mxu0 %v1170
        %1645 = vmatprep.subr.mxu0 0.0
        %1646 = vmatpush1.msra.mxu0 %v1171
        %1647 = vmatprep.subr.mxu0 0.0
        %1648 = vmatpush1.msra.mxu0 %v1172
        %1649 = vmatprep.subr.mxu0 0.0
        %1650 = vmatpush1.msra.mxu0 %v1173
        %1651 = vmatprep.subr.mxu0 0.0
        %1652 = vmatpush1.msra.mxu0 %v1174
        %1653 = vmatprep.subr.mxu0 0.0
        %1654 = vmatpush1.msra.mxu0 %v1175
        %1655 = vmatprep.subr.mxu0 0.0
        %1656 = vmatpush1.msra.mxu0 %v1176
        %1657 = vmatprep.subr.mxu0 0.0
        %1658 = vmatpush1.msra.mxu0 %v1177
        %1659 = vmatprep.subr.mxu0 0.0
        %1660 = vmatpush1.msra.mxu0 %v1178
        %1661 = vmatprep.subr.mxu0 0.0
        %1662 = vmatpush1.msra.mxu0 %v1179
        %1663 = vmatprep.subr.mxu0 0.0
        %1664 = vmatpush1.msra.mxu0 %v1180
        %1665 = vmatprep.subr.mxu0 0.0
        %1666 = vmatpush1.msra.mxu0 %v1181
        %1667 = vmatprep.subr.mxu0 0.0
        %1668 = vmatpush1.msra.mxu0 %v1182
        %1669 = vmatprep.subr.mxu0 0.0
        %1670 = vmatpush1.msra.mxu0 %v1183
        %1671 = vmatprep.subr.mxu0 0.0
        %1672 = vmatpush1.msra.mxu0 %v1184
        %1673 = vmatprep.subr.mxu0 0.0
        %1674 = vmatpush1.msra.mxu0 %v1185
        %1675 = vmatprep.subr.mxu0 0.0
        %1676 = vmatpush1.msra.mxu0 %v1186
        %1677 = vmatprep.subr.mxu0 0.0
        %1678 = vmatpush1.msra.mxu0 %v1187
        %1679 = vmatprep.subr.mxu0 0.0
        %1680 = vmatpush1.msra.mxu0 %v1188
        %1681 = vmatprep.subr.mxu0 0.0
        %1682 = vmatpush1.msra.mxu0 %v1189
        %1683 = vmatprep.mubr.f32.mxu0 %v1057
        %1684 = vmatmul.mubr.f32.gmra.mrb[0].mxu0 %v1056
        %v1685 = vpop.f32.mrb[0].mxu0
        %v1686 = vadd.f32 %v1616, %v1685
        %v1687 = vpop.f32.mrb[0].mxu0
        %1688 = vdwg.mxu0
        %1689 = vmatprep.subr.mxu0 0.0
        %1690 = vmatpush1.msra.mxu0 %v1190
        %1691 = vmatprep.subr.mxu0 0.0
        %1692 = vmatpush1.msra.mxu0 %v1191
        %1693 = vmatprep.subr.mxu0 0.0
        %1694 = vmatpush1.msra.mxu0 %v1192
        %1695 = vmatprep.subr.mxu0 0.0
        %1696 = vmatpush1.msra.mxu0 %v1193
        %1697 = vmatprep.subr.mxu0 0.0
        %1698 = vmatpush1.msra.mxu0 %v1194
        %1699 = vmatprep.subr.mxu0 0.0
        %1700 = vmatpush1.msra.mxu0 %v1195
        %1701 = vmatprep.subr.mxu0 0.0
        %1702 = vmatpush1.msra.mxu0 %v1196
        %1703 = vmatprep.subr.mxu0 0.0
        %1704 = vmatpush1.msra.mxu0 %v1197
        %1705 = vmatprep.subr.mxu0 0.0
        %1706 = vmatpush1.msra.mxu0 %v1198
        %1707 = vmatprep.subr.mxu0 0.0
        %1708 = vmatpush1.msra.mxu0 %v1199
        %1709 = vmatprep.subr.mxu0 0.0
        %1710 = vmatpush1.msra.mxu0 %v1200
        %1711 = vmatprep.subr.mxu0 0.0
        %1712 = vmatpush1.msra.mxu0 %v1201
        %1713 = vmatprep.subr.mxu0 0.0
        %1714 = vmatpush1.msra.mxu0 %v1202
        %1715 = vmatprep.subr.mxu0 0.0
        %1716 = vmatpush1.msra.mxu0 %v1203
        %1717 = vmatprep.subr.mxu0 0.0
        %1718 = vmatpush1.msra.mxu0 %v1204
        %1719 = vmatprep.subr.mxu0 0.0
        %1720 = vmatpush1.msra.mxu0 %v1205
        %1721 = vmatprep.subr.mxu0 0.0
        %1722 = vmatpush1.msra.mxu0 %v1206
        %1723 = vmatprep.subr.mxu0 0.0
        %1724 = vmatpush1.msra.mxu0 %v1207
        %1725 = vmatprep.subr.mxu0 0.0
        %1726 = vmatpush1.msra.mxu0 %v1208
        %1727 = vmatprep.subr.mxu0 0.0
        %1728 = vmatpush1.msra.mxu0 %v1209
        %1729 = vmatprep.subr.mxu0 0.0
        %1730 = vmatpush1.msra.mxu0 %v1210
        %1731 = vmatprep.subr.mxu0 0.0
        %1732 = vmatpush1.msra.mxu0 %v1211
        %1733 = vmatprep.subr.mxu0 0.0
        %1734 = vmatpush1.msra.mxu0 %v1212
        %1735 = vmatprep.subr.mxu0 0.0
        %1736 = vmatpush1.msra.mxu0 %v1213
        %1737 = vmatprep.subr.mxu0 0.0
        %1738 = vmatpush1.msra.mxu0 %v1214
        %1739 = vmatprep.subr.mxu0 0.0
        %1740 = vmatpush1.msra.mxu0 %v1215
        %1741 = vmatprep.subr.mxu0 0.0
        %1742 = vmatpush1.msra.mxu0 %v1216
        %1743 = vmatprep.subr.mxu0 0.0
        %1744 = vmatpush1.msra.mxu0 %v1217
        %1745 = vmatprep.subr.mxu0 0.0
        %1746 = vmatpush1.msra.mxu0 %v1218
        %1747 = vmatprep.subr.mxu0 0.0
        %1748 = vmatpush1.msra.mxu0 %v1219
        %1749 = vmatprep.subr.mxu0 0.0
        %1750 = vmatpush1.msra.mxu0 %v1220
        %1751 = vmatprep.subr.mxu0 0.0
        %1752 = vmatpush1.msra.mxu0 %v1221
        %1753 = vmatprep.mubr.f32.mxu0 %v1061
        %1754 = vmatmul.mubr.f32.gmra.mrb[0].mxu0 %v1060
        %v1755 = vpop.f32.mrb[0].mxu0
        %v1756 = vadd.f32 %v1686, %v1755
        %v1757 = vpop.f32.mrb[0].mxu0
        %1758 = vdwg.mxu0
        %1759 = vmatprep.subr.mxu0 0.0
        %1760 = vmatpush1.msra.mxu0 %v1222
        %1761 = vmatprep.subr.mxu0 0.0
        %1762 = vmatpush1.msra.mxu0 %v1223
        %1763 = vmatprep.subr.mxu0 0.0
        %1764 = vmatpush1.msra.mxu0 %v1224
        %1765 = vmatprep.subr.mxu0 0.0
        %1766 = vmatpush1.msra.mxu0 %v1225
        %1767 = vmatprep.subr.mxu0 0.0
        %1768 = vmatpush1.msra.mxu0 %v1226
        %1769 = vmatprep.subr.mxu0 0.0
        %1770 = vmatpush1.msra.mxu0 %v1227
        %1771 = vmatprep.subr.mxu0 0.0
        %1772 = vmatpush1.msra.mxu0 %v1228
        %1773 = vmatprep.subr.mxu0 0.0
        %1774 = vmatpush1.msra.mxu0 %v1229
        %1775 = vmatprep.subr.mxu0 0.0
        %1776 = vmatpush1.msra.mxu0 %v1230
        %1777 = vmatprep.subr.mxu0 0.0
        %1778 = vmatpush1.msra.mxu0 %v1231
        %1779 = vmatprep.subr.mxu0 0.0
        %1780 = vmatpush1.msra.mxu0 %v1232
        %1781 = vmatprep.subr.mxu0 0.0
        %1782 = vmatpush1.msra.mxu0 %v1233
        %1783 = vmatprep.subr.mxu0 0.0
        %1784 = vmatpush1.msra.mxu0 %v1234
        %1785 = vmatprep.subr.mxu0 0.0
        %1786 = vmatpush1.msra.mxu0 %v1235
        %1787 = vmatprep.subr.mxu0 0.0
        %1788 = vmatpush1.msra.mxu0 %v1236
        %1789 = vmatprep.subr.mxu0 0.0
        %1790 = vmatpush1.msra.mxu0 %v1237
        %1791 = vmatprep.subr.mxu0 0.0
        %1792 = vmatpush1.msra.mxu0 %v1238
        %1793 = vmatprep.subr.mxu0 0.0
        %1794 = vmatpush1.msra.mxu0 %v1239
        %1795 = vmatprep.subr.mxu0 0.0
        %1796 = vmatpush1.msra.mxu0 %v1240
        %1797 = vmatprep.subr.mxu0 0.0
        %1798 = vmatpush1.msra.mxu0 %v1241
        %1799 = vmatprep.subr.mxu0 0.0
        %1800 = vmatpush1.msra.mxu0 %v1242
        %1801 = vmatprep.subr.mxu0 0.0
        %1802 = vmatpush1.msra.mxu0 %v1243
        %1803 = vmatprep.subr.mxu0 0.0
        %1804 = vmatpush1.msra.mxu0 %v1244
        %1805 = vmatprep.subr.mxu0 0.0
        %1806 = vmatpush1.msra.mxu0 %v1245
        %1807 = vmatprep.subr.mxu0 0.0
        %1808 = vmatpush1.msra.mxu0 %v1246
        %1809 = vmatprep.subr.mxu0 0.0
        %1810 = vmatpush1.msra.mxu0 %v1247
        %1811 = vmatprep.subr.mxu0 0.0
        %1812 = vmatpush1.msra.mxu0 %v1248
        %1813 = vmatprep.subr.mxu0 0.0
        %1814 = vmatpush1.msra.mxu0 %v1249
        %1815 = vmatprep.subr.mxu0 0.0
        %1816 = vmatpush1.msra.mxu0 %v1250
        %1817 = vmatprep.subr.mxu0 0.0
        %1818 = vmatpush1.msra.mxu0 %v1251
        %1819 = vmatprep.subr.mxu0 0.0
        %1820 = vmatpush1.msra.mxu0 %v1252
        %1821 = vmatprep.subr.mxu0 0.0
        %1822 = vmatpush1.msra.mxu0 %v1253
        %1823 = vmatprep.mubr.f32.mxu0 %v1065
        %1824 = vmatmul.mubr.f32.gmra.mrb[0].mxu0 %v1064
        %v1825 = vpop.f32.mrb[0].mxu0
        %v1826 = vadd.f32 %v1756, %v1825
        %v1827 = vpop.f32.mrb[0].mxu0
        %1828 = vdwg.mxu0
        %1829 = vmatprep.subr.mxu0 0.0
        %1830 = vmatpush1.msra.mxu0 %v1254
        %1831 = vmatprep.subr.mxu0 0.0
        %1832 = vmatpush1.msra.mxu0 %v1255
        %1833 = vmatprep.subr.mxu0 0.0
        %1834 = vmatpush1.msra.mxu0 %v1256
        %1835 = vmatprep.subr.mxu0 0.0
        %1836 = vmatpush1.msra.mxu0 %v1257
        %1837 = vmatprep.subr.mxu0 0.0
        %1838 = vmatpush1.msra.mxu0 %v1258
        %1839 = vmatprep.subr.mxu0 0.0
        %1840 = vmatpush1.msra.mxu0 %v1259
        %1841 = vmatprep.subr.mxu0 0.0
        %1842 = vmatpush1.msra.mxu0 %v1260
        %1843 = vmatprep.subr.mxu0 0.0
        %1844 = vmatpush1.msra.mxu0 %v1261
        %1845 = vmatprep.subr.mxu0 0.0
        %1846 = vmatpush1.msra.mxu0 %v1262
        %1847 = vmatprep.subr.mxu0 0.0
        %1848 = vmatpush1.msra.mxu0 %v1263
        %1849 = vmatprep.subr.mxu0 0.0
        %1850 = vmatpush1.msra.mxu0 %v1264
        %1851 = vmatprep.subr.mxu0 0.0
        %1852 = vmatpush1.msra.mxu0 %v1265
        %1853 = vmatprep.subr.mxu0 0.0
        %1854 = vmatpush1.msra.mxu0 %v1266
        %1855 = vmatprep.subr.mxu0 0.0
        %1856 = vmatpush1.msra.mxu0 %v1267
        %1857 = vmatprep.subr.mxu0 0.0
        %1858 = vmatpush1.msra.mxu0 %v1268
        %1859 = vmatprep.subr.mxu0 0.0
        %1860 = vmatpush1.msra.mxu0 %v1269
        %1861 = vmatprep.subr.mxu0 0.0
        %1862 = vmatpush1.msra.mxu0 %v1270
        %1863 = vmatprep.subr.mxu0 0.0
        %1864 = vmatpush1.msra.mxu0 %v1271
        %1865 = vmatprep.subr.mxu0 0.0
        %1866 = vmatpush1.msra.mxu0 %v1272
        %1867 = vmatprep.subr.mxu0 0.0
        %1868 = vmatpush1.msra.mxu0 %v1273
        %1869 = vmatprep.subr.mxu0 0.0
        %1870 = vmatpush1.msra.mxu0 %v1274
        %1871 = vmatprep.subr.mxu0 0.0
        %1872 = vmatpush1.msra.mxu0 %v1275
        %1873 = vmatprep.subr.mxu0 0.0
        %1874 = vmatpush1.msra.mxu0 %v1276
        %1875 = vmatprep.subr.mxu0 0.0
        %1876 = vmatpush1.msra.mxu0 %v1277
        %1877 = vmatprep.subr.mxu0 0.0
        %1878 = vmatpush1.msra.mxu0 %v1278
        %1879 = vmatprep.subr.mxu0 0.0
        %1880 = vmatpush1.msra.mxu0 %v1279
        %1881 = vmatprep.subr.mxu0 0.0
        %1882 = vmatpush1.msra.mxu0 %v1280
        %1883 = vmatprep.subr.mxu0 0.0
        %1884 = vmatpush1.msra.mxu0 %v1281
        %1885 = vmatprep.subr.mxu0 0.0
        %1886 = vmatpush1.msra.mxu0 %v1282
        %1887 = vmatprep.subr.mxu0 0.0
        %1888 = vmatpush1.msra.mxu0 %v1283
        %1889 = vmatprep.subr.mxu0 0.0
        %1890 = vmatpush1.msra.mxu0 %v1284
        %1891 = vmatprep.subr.mxu0 0.0
        %1892 = vmatpush1.msra.mxu0 %v1285
        %1893 = vmatprep.mubr.f32.mxu0 %v1069
        %1894 = vmatmul.mubr.f32.gmra.mrb[0].mxu0 %v1068
        %v1895 = vpop.f32.mrb[0].mxu0
        %v1896 = vadd.f32 %v1826, %v1895
        %v1897 = vpop.f32.mrb[0].mxu0
        %1898 = vdwg.mxu0
        %1899 = vmatprep.subr.mxu0 0.0
        %1900 = vmatpush1.msra.mxu0 %v1286
        %1901 = vmatprep.subr.mxu0 0.0
        %1902 = vmatpush1.msra.mxu0 %v1287
        %1903 = vmatprep.subr.mxu0 0.0
        %1904 = vmatpush1.msra.mxu0 %v1288
        %1905 = vmatprep.subr.mxu0 0.0
        %1906 = vmatpush1.msra.mxu0 %v1289
        %1907 = vmatprep.subr.mxu0 0.0
        %1908 = vmatpush1.msra.mxu0 %v1290
        %1909 = vmatprep.subr.mxu0 0.0
        %1910 = vmatpush1.msra.mxu0 %v1291
        %1911 = vmatprep.subr.mxu0 0.0
        %1912 = vmatpush1.msra.mxu0 %v1292
        %1913 = vmatprep.subr.mxu0 0.0
        %1914 = vmatpush1.msra.mxu0 %v1293
        %1915 = vmatprep.subr.mxu0 0.0
        %1916 = vmatpush1.msra.mxu0 %v1294
        %1917 = vmatprep.subr.mxu0 0.0
        %1918 = vmatpush1.msra.mxu0 %v1295
        %1919 = vmatprep.subr.mxu0 0.0
        %1920 = vmatpush1.msra.mxu0 %v1296
        %1921 = vmatprep.subr.mxu0 0.0
        %1922 = vmatpush1.msra.mxu0 %v1297
        %1923 = vmatprep.subr.mxu0 0.0
        %1924 = vmatpush1.msra.mxu0 %v1298
        %1925 = vmatprep.subr.mxu0 0.0
        %1926 = vmatpush1.msra.mxu0 %v1299
        %1927 = vmatprep.subr.mxu0 0.0
        %1928 = vmatpush1.msra.mxu0 %v1300
        %1929 = vmatprep.subr.mxu0 0.0
        %1930 = vmatpush1.msra.mxu0 %v1301
        %1931 = vmatprep.subr.mxu0 0.0
        %1932 = vmatpush1.msra.mxu0 %v1302
        %1933 = vmatprep.subr.mxu0 0.0
        %1934 = vmatpush1.msra.mxu0 %v1303
        %1935 = vmatprep.subr.mxu0 0.0
        %1936 = vmatpush1.msra.mxu0 %v1304
        %1937 = vmatprep.subr.mxu0 0.0
        %1938 = vmatpush1.msra.mxu0 %v1305
        %1939 = vmatprep.subr.mxu0 0.0
        %1940 = vmatpush1.msra.mxu0 %v1306
        %1941 = vmatprep.subr.mxu0 0.0
        %1942 = vmatpush1.msra.mxu0 %v1307
        %1943 = vmatprep.subr.mxu0 0.0
        %1944 = vmatpush1.msra.mxu0 %v1308
        %1945 = vmatprep.subr.mxu0 0.0
        %1946 = vmatpush1.msra.mxu0 %v1309
        %1947 = vmatprep.subr.mxu0 0.0
        %1948 = vmatpush1.msra.mxu0 %v1310
        %1949 = vmatprep.subr.mxu0 0.0
        %1950 = vmatpush1.msra.mxu0 %v1311
        %1951 = vmatprep.subr.mxu0 0.0
        %1952 = vmatpush1.msra.mxu0 %v1312
        %1953 = vmatprep.subr.mxu0 0.0
        %1954 = vmatpush1.msra.mxu0 %v1313
        %1955 = vmatprep.subr.mxu0 0.0
        %1956 = vmatpush1.msra.mxu0 %v1314
        %1957 = vmatprep.subr.mxu0 0.0
        %1958 = vmatpush1.msra.mxu0 %v1315
        %1959 = vmatprep.subr.mxu0 0.0
        %1960 = vmatpush1.msra.mxu0 %v1316
        %1961 = vmatprep.subr.mxu0 0.0
        %1962 = vmatpush1.msra.mxu0 %v1317
        %1963 = vmatprep.mubr.f32.mxu0 %v1073
        %1964 = vmatmul.mubr.f32.gmra.mrb[0].mxu0 %v1072
        %v1965 = vpop.f32.mrb[0].mxu0
        %v1966 = vadd.f32 %v1896, %v1965
        %v1967 = vpop.f32.mrb[0].mxu0
        %1968 = vdwg.mxu0
        %1969 = vmatprep.subr.mxu0 0.0
        %1970 = vmatpush1.msra.mxu0 %v1318
        %1971 = vmatprep.subr.mxu0 0.0
        %1972 = vmatpush1.msra.mxu0 %v1319
        %1973 = vmatprep.subr.mxu0 0.0
        %1974 = vmatpush1.msra.mxu0 %v1320
        %1975 = vmatprep.subr.mxu0 0.0
        %1976 = vmatpush1.msra.mxu0 %v1321
        %1977 = vmatprep.subr.mxu0 0.0
        %1978 = vmatpush1.msra.mxu0 %v1322
        %1979 = vmatprep.subr.mxu0 0.0
        %1980 = vmatpush1.msra.mxu0 %v1323
        %1981 = vmatprep.subr.mxu0 0.0
        %1982 = vmatpush1.msra.mxu0 %v1324
        %1983 = vmatprep.subr.mxu0 0.0
        %1984 = vmatpush1.msra.mxu0 %v1325
        %1985 = vmatprep.subr.mxu0 0.0
        %1986 = vmatpush1.msra.mxu0 %v1326
        %1987 = vmatprep.subr.mxu0 0.0
        %1988 = vmatpush1.msra.mxu0 %v1327
        %1989 = vmatprep.subr.mxu0 0.0
        %1990 = vmatpush1.msra.mxu0 %v1328
        %1991 = vmatprep.subr.mxu0 0.0
        %1992 = vmatpush1.msra.mxu0 %v1329
        %1993 = vmatprep.subr.mxu0 0.0
        %1994 = vmatpush1.msra.mxu0 %v1330
        %1995 = vmatprep.subr.mxu0 0.0
        %1996 = vmatpush1.msra.mxu0 %v1331
        %1997 = vmatprep.subr.mxu0 0.0
        %1998 = vmatpush1.msra.mxu0 %v1332
        %1999 = vmatprep.subr.mxu0 0.0
        %2000 = vmatpush1.msra.mxu0 %v1333
        %2001 = vmatprep.subr.mxu0 0.0
        %2002 = vmatpush1.msra.mxu0 %v1334
        %2003 = vmatprep.subr.mxu0 0.0
        %2004 = vmatpush1.msra.mxu0 %v1335
        %2005 = vmatprep.subr.mxu0 0.0
        %2006 = vmatpush1.msra.mxu0 %v1336
        %2007 = vmatprep.subr.mxu0 0.0
        %2008 = vmatpush1.msra.mxu0 %v1337
        %2009 = vmatprep.subr.mxu0 0.0
        %2010 = vmatpush1.msra.mxu0 %v1338
        %2011 = vmatprep.subr.mxu0 0.0
        %2012 = vmatpush1.msra.mxu0 %v1339
        %2013 = vmatprep.subr.mxu0 0.0
        %2014 = vmatpush1.msra.mxu0 %v1340
        %2015 = vmatprep.subr.mxu0 0.0
        %2016 = vmatpush1.msra.mxu0 %v1341
        %2017 = vmatprep.subr.mxu0 0.0
        %2018 = vmatpush1.msra.mxu0 %v1342
        %2019 = vmatprep.subr.mxu0 0.0
        %2020 = vmatpush1.msra.mxu0 %v1343
        %2021 = vmatprep.subr.mxu0 0.0
        %2022 = vmatpush1.msra.mxu0 %v1344
        %2023 = vmatprep.subr.mxu0 0.0
        %2024 = vmatpush1.msra.mxu0 %v1345
        %2025 = vmatprep.subr.mxu0 0.0
        %2026 = vmatpush1.msra.mxu0 %v1346
        %2027 = vmatprep.subr.mxu0 0.0
        %2028 = vmatpush1.msra.mxu0 %v1347
        %2029 = vmatprep.subr.mxu0 0.0
        %2030 = vmatpush1.msra.mxu0 %v1348
        %2031 = vmatprep.subr.mxu0 0.0
        %2032 = vmatpush1.msra.mxu0 %v1349
        %2033 = vmatprep.mubr.f32.mxu0 %v1077
        %2034 = vmatmul.mubr.f32.gmra.mrb[0].mxu0 %v1076
        %v2035 = vpop.f32.mrb[0].mxu0
        %v2036 = vadd.f32 %v1966, %v2035
        %v2037 = vpop.f32.mrb[0].mxu0
        %2038 = vdwg.mxu0
        %2039 = vmatprep.subr.mxu0 0.0
        %2040 = vmatpush1.msra.mxu0 %v1350
        %2041 = vmatprep.subr.mxu0 0.0
        %2042 = vmatpush1.msra.mxu0 %v1351
        %2043 = vmatprep.subr.mxu0 0.0
        %2044 = vmatpush1.msra.mxu0 %v1352
        %2045 = vmatprep.subr.mxu0 0.0
        %2046 = vmatpush1.msra.mxu0 %v1353
        %2047 = vmatprep.subr.mxu0 0.0
        %2048 = vmatpush1.msra.mxu0 %v1354
        %2049 = vmatprep.subr.mxu0 0.0
        %2050 = vmatpush1.msra.mxu0 %v1355
        %2051 = vmatprep.subr.mxu0 0.0
        %2052 = vmatpush1.msra.mxu0 %v1356
        %2053 = vmatprep.subr.mxu0 0.0
        %2054 = vmatpush1.msra.mxu0 %v1357
        %2055 = vmatprep.subr.mxu0 0.0
        %2056 = vmatpush1.msra.mxu0 %v1358
        %2057 = vmatprep.subr.mxu0 0.0
        %2058 = vmatpush1.msra.mxu0 %v1359
        %2059 = vmatprep.subr.mxu0 0.0
        %2060 = vmatpush1.msra.mxu0 %v1360
        %2061 = vmatprep.subr.mxu0 0.0
        %2062 = vmatpush1.msra.mxu0 %v1361
        %2063 = vmatprep.subr.mxu0 0.0
        %2064 = vmatpush1.msra.mxu0 %v1362
        %2065 = vmatprep.subr.mxu0 0.0
        %2066 = vmatpush1.msra.mxu0 %v1363
        %2067 = vmatprep.subr.mxu0 0.0
        %2068 = vmatpush1.msra.mxu0 %v1364
        %2069 = vmatprep.subr.mxu0 0.0
        %2070 = vmatpush1.msra.mxu0 %v1365
        %2071 = vmatprep.subr.mxu0 0.0
        %2072 = vmatpush1.msra.mxu0 %v1366
        %2073 = vmatprep.subr.mxu0 0.0
        %2074 = vmatpush1.msra.mxu0 %v1367
        %2075 = vmatprep.subr.mxu0 0.0
        %2076 = vmatpush1.msra.mxu0 %v1368
        %2077 = vmatprep.subr.mxu0 0.0
        %2078 = vmatpush1.msra.mxu0 %v1369
        %2079 = vmatprep.subr.mxu0 0.0
        %2080 = vmatpush1.msra.mxu0 %v1370
        %2081 = vmatprep.subr.mxu0 0.0
        %2082 = vmatpush1.msra.mxu0 %v1371
        %2083 = vmatprep.subr.mxu0 0.0
        %2084 = vmatpush1.msra.mxu0 %v1372
        %2085 = vmatprep.subr.mxu0 0.0
        %2086 = vmatpush1.msra.mxu0 %v1373
        %2087 = vmatprep.subr.mxu0 0.0
        %2088 = vmatpush1.msra.mxu0 %v1374
        %2089 = vmatprep.subr.mxu0 0.0
        %2090 = vmatpush1.msra.mxu0 %v1375
        %2091 = vmatprep.subr.mxu0 0.0
        %2092 = vmatpush1.msra.mxu0 %v1376
        %2093 = vmatprep.subr.mxu0 0.0
        %2094 = vmatpush1.msra.mxu0 %v1377
        %2095 = vmatprep.subr.mxu0 0.0
        %2096 = vmatpush1.msra.mxu0 %v1378
        %2097 = vmatprep.subr.mxu0 0.0
        %2098 = vmatpush1.msra.mxu0 %v1379
        %2099 = vmatprep.subr.mxu0 0.0
        %2100 = vmatpush1.msra.mxu0 %v1380
        %2101 = vmatprep.subr.mxu0 0.0
        %2102 = vmatpush1.msra.mxu0 %v1381
        %2103 = vmatprep.mubr.f32.mxu0 %v1049
        %2104 = vmatmul.mubr.f32.gmra.mrb[0].mxu0 %v1048
        %v2105 = vpop.f32.mrb[0].mxu0
        %v2106 = vadd.f32 %v2036, %v2105
        %v2107 = vpop.f32.mrb[0].mxu0
        %2108 = vdwg.mxu0
        %2109 = vmatprep.subr.mxu0 0.0
        %2110 = vmatpush1.msra.mxu0 %v1382
        %2111 = vmatprep.subr.mxu0 0.0
        %2112 = vmatpush1.msra.mxu0 %v1383
        %2113 = vmatprep.subr.mxu0 0.0
        %2114 = vmatpush1.msra.mxu0 %v1384
        %2115 = vmatprep.subr.mxu0 0.0
        %2116 = vmatpush1.msra.mxu0 %v1385
        %2117 = vmatprep.subr.mxu0 0.0
        %2118 = vmatpush1.msra.mxu0 %v1386
        %2119 = vmatprep.subr.mxu0 0.0
        %2120 = vmatpush1.msra.mxu0 %v1387
        %2121 = vmatprep.subr.mxu0 0.0
        %2122 = vmatpush1.msra.mxu0 %v1388
        %2123 = vmatprep.subr.mxu0 0.0
        %2124 = vmatpush1.msra.mxu0 %v1389
        %2125 = vmatprep.subr.mxu0 0.0
        %2126 = vmatpush1.msra.mxu0 %v1390
        %2127 = vmatprep.subr.mxu0 0.0
        %2128 = vmatpush1.msra.mxu0 %v1391
        %2129 = vmatprep.subr.mxu0 0.0
        %2130 = vmatpush1.msra.mxu0 %v1392
        %2131 = vmatprep.subr.mxu0 0.0
        %2132 = vmatpush1.msra.mxu0 %v1393
        %2133 = vmatprep.subr.mxu0 0.0
        %2134 = vmatpush1.msra.mxu0 %v1394
        %2135 = vmatprep.subr.mxu0 0.0
        %2136 = vmatpush1.msra.mxu0 %v1395
        %2137 = vmatprep.subr.mxu0 0.0
        %2138 = vmatpush1.msra.mxu0 %v1396
        %2139 = vmatprep.subr.mxu0 0.0
        %2140 = vmatpush1.msra.mxu0 %v1397
        %2141 = vmatprep.subr.mxu0 0.0
        %2142 = vmatpush1.msra.mxu0 %v1398
        %2143 = vmatprep.subr.mxu0 0.0
        %2144 = vmatpush1.msra.mxu0 %v1399
        %2145 = vmatprep.subr.mxu0 0.0
        %2146 = vmatpush1.msra.mxu0 %v1400
        %2147 = vmatprep.subr.mxu0 0.0
        %2148 = vmatpush1.msra.mxu0 %v1401
        %2149 = vmatprep.subr.mxu0 0.0
        %2150 = vmatpush1.msra.mxu0 %v1402
        %2151 = vmatprep.subr.mxu0 0.0
        %2152 = vmatpush1.msra.mxu0 %v1403
        %2153 = vmatprep.subr.mxu0 0.0
        %2154 = vmatpush1.msra.mxu0 %v1404
        %2155 = vmatprep.subr.mxu0 0.0
        %2156 = vmatpush1.msra.mxu0 %v1405
        %2157 = vmatprep.subr.mxu0 0.0
        %2158 = vmatpush1.msra.mxu0 %v1406
        %2159 = vmatprep.subr.mxu0 0.0
        %2160 = vmatpush1.msra.mxu0 %v1407
        %2161 = vmatprep.subr.mxu0 0.0
        %2162 = vmatpush1.msra.mxu0 %v1408
        %2163 = vmatprep.subr.mxu0 0.0
        %2164 = vmatpush1.msra.mxu0 %v1409
        %2165 = vmatprep.subr.mxu0 0.0
        %2166 = vmatpush1.msra.mxu0 %v1410
        %2167 = vmatprep.subr.mxu0 0.0
        %2168 = vmatpush1.msra.mxu0 %v1411
        %2169 = vmatprep.subr.mxu0 0.0
        %2170 = vmatpush1.msra.mxu0 %v1412
        %2171 = vmatprep.subr.mxu0 0.0
        %2172 = vmatpush1.msra.mxu0 %v1413
        %2173 = vmatprep.mubr.f32.mxu0 %v1083
        %2174 = vmatmul.mubr.f32.gmra.mrb[0].mxu0 %v1082
        %v2175 = vpop.f32.mrb[0].mxu0
        %v2176 = vadd.f32 %v2106, %v2175
        %v2177 = vpop.f32.mrb[0].mxu0
        %2178 = vdwg.mxu0
        %2179 = vmatprep.subr.mxu0 0.0
        %2180 = vmatpush1.msra.mxu0 %v1414
        %2181 = vmatprep.subr.mxu0 0.0
        %2182 = vmatpush1.msra.mxu0 %v1415
        %2183 = vmatprep.subr.mxu0 0.0
        %2184 = vmatpush1.msra.mxu0 %v1416
        %2185 = vmatprep.subr.mxu0 0.0
        %2186 = vmatpush1.msra.mxu0 %v1417
        %2187 = vmatprep.subr.mxu0 0.0
        %2188 = vmatpush1.msra.mxu0 %v1418
        %2189 = vmatprep.subr.mxu0 0.0
        %2190 = vmatpush1.msra.mxu0 %v1419
        %2191 = vmatprep.subr.mxu0 0.0
        %2192 = vmatpush1.msra.mxu0 %v1420
        %2193 = vmatprep.subr.mxu0 0.0
        %2194 = vmatpush1.msra.mxu0 %v1421
        %2195 = vmatprep.subr.mxu0 0.0
        %2196 = vmatpush1.msra.mxu0 %v1422
        %2197 = vmatprep.subr.mxu0 0.0
        %2198 = vmatpush1.msra.mxu0 %v1423
        %2199 = vmatprep.subr.mxu0 0.0
        %2200 = vmatpush1.msra.mxu0 %v1424
        %2201 = vmatprep.subr.mxu0 0.0
        %2202 = vmatpush1.msra.mxu0 %v1425
        %2203 = vmatprep.subr.mxu0 0.0
        %2204 = vmatpush1.msra.mxu0 %v1426
        %2205 = vmatprep.subr.mxu0 0.0
        %2206 = vmatpush1.msra.mxu0 %v1427
        %2207 = vmatprep.subr.mxu0 0.0
        %2208 = vmatpush1.msra.mxu0 %v1428
        %2209 = vmatprep.subr.mxu0 0.0
        %2210 = vmatpush1.msra.mxu0 %v1429
        %2211 = vmatprep.subr.mxu0 0.0
        %2212 = vmatpush1.msra.mxu0 %v1430
        %2213 = vmatprep.subr.mxu0 0.0
        %2214 = vmatpush1.msra.mxu0 %v1431
        %2215 = vmatprep.subr.mxu0 0.0
        %2216 = vmatpush1.msra.mxu0 %v1432
        %2217 = vmatprep.subr.mxu0 0.0
        %2218 = vmatpush1.msra.mxu0 %v1433
        %2219 = vmatprep.subr.mxu0 0.0
        %2220 = vmatpush1.msra.mxu0 %v1434
        %2221 = vmatprep.subr.mxu0 0.0
        %2222 = vmatpush1.msra.mxu0 %v1435
        %2223 = vmatprep.subr.mxu0 0.0
        %2224 = vmatpush1.msra.mxu0 %v1436
        %2225 = vmatprep.subr.mxu0 0.0
        %2226 = vmatpush1.msra.mxu0 %v1437
        %2227 = vmatprep.subr.mxu0 0.0
        %2228 = vmatpush1.msra.mxu0 %v1438
        %2229 = vmatprep.subr.mxu0 0.0
        %2230 = vmatpush1.msra.mxu0 %v1439
        %2231 = vmatprep.subr.mxu0 0.0
        %2232 = vmatpush1.msra.mxu0 %v1440
        %2233 = vmatprep.subr.mxu0 0.0
        %2234 = vmatpush1.msra.mxu0 %v1441
        %2235 = vmatprep.subr.mxu0 0.0
        %2236 = vmatpush1.msra.mxu0 %v1442
        %2237 = vmatprep.subr.mxu0 0.0
        %2238 = vmatpush1.msra.mxu0 %v1443
        %2239 = vmatprep.subr.mxu0 0.0
        %2240 = vmatpush1.msra.mxu0 %v1444
        %2241 = vmatprep.subr.mxu0 0.0
        %2242 = vmatpush1.msra.mxu0 %v1445
        %2243 = vmatprep.mubr.f32.mxu0 %v1087
        %2244 = vmatmul.mubr.f32.gmra.mrb[0].mxu0 %v1086
        %v2245 = vpop.f32.mrb[0].mxu0
        %v2246 = vadd.f32 %v2176, %v2245
        %v2247 = vpop.f32.mrb[0].mxu0
        %2248 = vdwg.mxu0
        %2249 = vmatprep.subr.mxu0 0.0
        %2250 = vmatpush1.msra.mxu0 %v1446
        %2251 = vmatprep.subr.mxu0 0.0
        %2252 = vmatpush1.msra.mxu0 %v1447
        %2253 = vmatprep.subr.mxu0 0.0
        %2254 = vmatpush1.msra.mxu0 %v1448
        %2255 = vmatprep.subr.mxu0 0.0
        %2256 = vmatpush1.msra.mxu0 %v1449
        %2257 = vmatprep.subr.mxu0 0.0
        %2258 = vmatpush1.msra.mxu0 %v1450
        %2259 = vmatprep.subr.mxu0 0.0
        %2260 = vmatpush1.msra.mxu0 %v1451
        %2261 = vmatprep.subr.mxu0 0.0
        %2262 = vmatpush1.msra.mxu0 %v1452
        %2263 = vmatprep.subr.mxu0 0.0
        %2264 = vmatpush1.msra.mxu0 %v1453
        %2265 = vmatprep.subr.mxu0 0.0
        %2266 = vmatpush1.msra.mxu0 %v1454
        %2267 = vmatprep.subr.mxu0 0.0
        %2268 = vmatpush1.msra.mxu0 %v1455
        %2269 = vmatprep.subr.mxu0 0.0
        %2270 = vmatpush1.msra.mxu0 %v1456
        %2271 = vmatprep.subr.mxu0 0.0
        %2272 = vmatpush1.msra.mxu0 %v1457
        %2273 = vmatprep.subr.mxu0 0.0
        %2274 = vmatpush1.msra.mxu0 %v1458
        %2275 = vmatprep.subr.mxu0 0.0
        %2276 = vmatpush1.msra.mxu0 %v1459
        %2277 = vmatprep.subr.mxu0 0.0
        %2278 = vmatpush1.msra.mxu0 %v1460
        %2279 = vmatprep.subr.mxu0 0.0
        %2280 = vmatpush1.msra.mxu0 %v1461
        %2281 = vmatprep.subr.mxu0 0.0
        %2282 = vmatpush1.msra.mxu0 %v1462
        %2283 = vmatprep.subr.mxu0 0.0
        %2284 = vmatpush1.msra.mxu0 %v1463
        %2285 = vmatprep.subr.mxu0 0.0
        %2286 = vmatpush1.msra.mxu0 %v1464
        %2287 = vmatprep.subr.mxu0 0.0
        %2288 = vmatpush1.msra.mxu0 %v1465
        %2289 = vmatprep.subr.mxu0 0.0
        %2290 = vmatpush1.msra.mxu0 %v1466
        %2291 = vmatprep.subr.mxu0 0.0
        %2292 = vmatpush1.msra.mxu0 %v1467
        %2293 = vmatprep.subr.mxu0 0.0
        %2294 = vmatpush1.msra.mxu0 %v1468
        %2295 = vmatprep.subr.mxu0 0.0
        %2296 = vmatpush1.msra.mxu0 %v1469
        %2297 = vmatprep.subr.mxu0 0.0
        %2298 = vmatpush1.msra.mxu0 %v1470
        %2299 = vmatprep.subr.mxu0 0.0
        %2300 = vmatpush1.msra.mxu0 %v1471
        %2301 = vmatprep.subr.mxu0 0.0
        %2302 = vmatpush1.msra.mxu0 %v1472
        %2303 = vmatprep.subr.mxu0 0.0
        %2304 = vmatpush1.msra.mxu0 %v1473
        %2305 = vmatprep.subr.mxu0 0.0
        %2306 = vmatpush1.msra.mxu0 %v1474
        %2307 = vmatprep.subr.mxu0 0.0
        %2308 = vmatpush1.msra.mxu0 %v1475
        %2309 = vmatprep.subr.mxu0 0.0
        %2310 = vmatpush1.msra.mxu0 %v1476
        %2311 = vmatprep.subr.mxu0 0.0
        %2312 = vmatpush1.msra.mxu0 %v1477
        %2313 = vmatprep.mubr.f32.mxu0 %v1091
        %2314 = vmatmul.mubr.f32.gmra.mrb[0].mxu0 %v1090
        %v2315 = vpop.f32.mrb[0].mxu0
        %v2316 = vadd.f32 %v2246, %v2315
        %v2317 = vpop.f32.mrb[0].mxu0
        %2318 = vdwg.mxu0
        %v2319 = vsub.f32 0.0, %v2316
        %v2320 = vmul.f32 %v2319, 1.442695
        %v2321 = vpow.pop %v2320
        %v2322 = vadd.f32 %v2321, 1.0
        %v2323 = vrcp.pop %v2322
        %v2324 = vmul.f32 1.0, %v2323
        %2325 = vst [vmem:[%s341] sm:$0x1] %v2324
        %p2326 = scmp.lt.s32.totalorder %s21, 1
        %s2327 = scalar_select %p2326, %s21, 1
        %s2328 = scalar_lea.vmem %s7, %s2327
        // Predicated region
        $region69: #{image_classification_forward.1} parent=47 // pred_check
          %p2329 = pneg %p191
        $region70: #{image_classification_forward.1} parent=47 // pred_check_branch
          %2331 = sbr.rel (%p2329) target = $region72
        $region71: #{image_classification_forward.1} parent=47 // pred_region
          _
        $region72: #{image_classification_forward.1} parent=47 // pred_fallthru
          _
      $region48: #{image_classification_forward.1} parent=5 // pred_fallthru
        _
      %p2332 = scmp.le.s32.totalorder 2, %s16
      // Predicated region
      $region73: #{image_classification_forward.1} parent=5 // pred_check
        %p2333 = pneg %p2332
      $region74: #{image_classification_forward.1} parent=5 // pred_check_branch
        %2335 = sbr.rel (%p2333) target = $region76
      $region75: #{image_classification_forward.1} parent=5 // pred_region
        %s2336 = ssub.s32 %s16, 2
        // Predicated region
        $region77: #{image_classification_forward.1} parent=75 // pred_check
          %p2337 = pneg %p197
        $region78: #{image_classification_forward.1} parent=75 // pred_check_branch
          %2339 = sbr.rel (%p2337) target = $region80
        $region79: #{image_classification_forward.1} parent=75 // pred_region
          %p2340 = scmp.lt.s32.totalorder %s22, 1
          %s2341 = scalar_select %p2340, %s22, 1
          %s2342 = scalar_lea.vmem %s7, %s2341
        $region80: #{image_classification_forward.1} parent=75 // pred_fallthru
          _
      $region76: #{image_classification_forward.1} parent=5 // pred_fallthru
        _
    $region6: #{image_classification_forward.1} parent=1 // loop_footer
      %s20 = sadd.s32 1, %s16
    $region7: #{image_classification_forward.1} parent=1 // loop_footer_branch
      %15 = sbr.rel target = $region3
    $region8: #{image_classification_forward.1} parent=1 // loop_exit
      _
    %2343 = vsyncpa [#allocation3], 1
    %s2344 = scalar_lea.sflag [#allocation3], 1
    %2345 = vsyncpa %s2344, 1
    %2346 = vsyncpa [#allocation5], 1
    %2347 = vsyncpa [#allocation8], 1

</llo_original>
